<compile_context>
chip_gen: v5e
topology: v5e:2x2
jax: 0.10.0
libtpu: 0.0.40
codegen_flags: <defaults>
</compile_context>

<pallas_src>
import jax
import jax.numpy as jnp
from jax import lax
from jax.experimental import pallas as pl
from jax.experimental.pallas import tpu as pltpu

# ----- small, deterministic problem sizes -----
B = 2            # batch
D_MODEL = 32     # decoder model width
D_INNER = 64     # mamba inner width
D_STATE = 8      # SSM state size
DT_RANK = 4      # delta low-rank
CONV_K = 4       # depthwise conv kernel size (causal, along sequence)
PATCH = 4        # output patch size
H = W = 16       # reconstructed image size
GH, GW = H // PATCH, W // PATCH
L = GH * GW                       # 16 tokens
P_OUT = 3 * PATCH * PATCH         # 48 pixels per token
P_PAD = 128                       # lane-dense padded head width
BL = B * L                        # 32 rows (batch-major token stacking)

# rows inside the packed f32 parameter slab (24, 128)
_ROW_SCALE = 0
_ROW_BIN = 1
_ROW_CONVB = 2
_ROW_BDT = 3
_ROW_D = 4
_ROW_CONVW = 8       # rows 8..11
_ROW_A = 16          # rows 16..23
P_ROWS = 24

# rows inside the packed bf16 weight slab (192, 128)
_W_IN0, _W_IN1 = 0, D_MODEL                        # in_proj (LN affine folded)
_W_SSM0, _W_SSM1 = D_MODEL, D_MODEL + D_INNER      # fused [dt | B | C | pad]
_W_OH0 = D_MODEL + D_INNER                         # fused [out_proj@head ; head]
W_ROWS = _W_OH0 + D_INNER + D_MODEL                # 192


def _mamba_decoder_kernel(x_ref, w_ref, p_ref, out_ref, decay_ref, h_ref):
    """Whole forward (both batch elements) in one invocation.

    Row layout is (b * L + t); channels run along lanes.
    """
    p = p_ref[...]                                        # (24, 128) f32
    scale = p[_ROW_SCALE:_ROW_SCALE + 1, :D_MODEL]        # (1, 32)
    b_in = p[_ROW_BIN:_ROW_BIN + 1, :]                    # (1, 128)
    conv_b = p[_ROW_CONVB:_ROW_CONVB + 1, :D_INNER]       # (1, 64)
    b_dt = p[_ROW_BDT:_ROW_BDT + 1, :D_INNER]             # (1, 64)
    d_skip = p[_ROW_D:_ROW_D + 1, :D_INNER]               # (1, 64)
    conv_w = p[_ROW_CONVW:_ROW_CONVW + CONV_K, :D_INNER]  # (4, 64)
    a_full = p[_ROW_A:_ROW_A + D_STATE, :D_INNER]         # (8, 64) == -exp(a_log)

    x = x_ref[...]                                        # (B*L, D_MODEL) f32
    xm = x * scale                                        # SNR channel modulation

    # ---- LayerNorm over channels (affine folded into w_in / b_in), f32 ----
    mu = jnp.mean(xm, axis=-1, keepdims=True)
    var = jnp.mean((xm - mu) ** 2, axis=-1, keepdims=True)
    xhat = (xm - mu) * lax.rsqrt(var + 1e-5)

    # ---- fused input projection -> (inner stream | gate); bf16 MXU ----
    xz = jnp.dot(xhat.astype(jnp.bfloat16), w_ref[_W_IN0:_W_IN1, :],
                 preferred_element_type=jnp.float32) + b_in    # (32, 128)
    xi = xz[:, :D_INNER]
    z = xz[:, D_INNER:]

    # ---- causal depthwise conv1d along sequence (per batch segment) + SiLU ----
    rows = lax.broadcasted_iota(jnp.int32, (BL, D_INNER), 0)
    tpos = jnp.where(rows >= L, rows - L, rows)           # token pos within batch
    acc = conv_w[CONV_K - 1:CONV_K, :] * xi               # shift 0 tap
    for k in range(CONV_K - 1):
        s = CONV_K - 1 - k                                 # shifts 3, 2, 1
        xs = pltpu.roll(xi, shift=s, axis=0)
        xs = jnp.where(tpos >= s, xs, 0.0)                 # causal / batch boundary
        acc = acc + conv_w[k:k + 1, :] * xs
    xc = acc + conv_b
    xc = xc * jax.nn.sigmoid(xc)                           # SiLU, f32

    # ---- single fused SSM projection: [dt_pre(64) | B(8) | C(8) | pad] ----
    dbc = jnp.dot(xc.astype(jnp.bfloat16), w_ref[_W_SSM0:_W_SSM1, :],
                  preferred_element_type=jnp.float32)      # (32, 128)
    dt = jax.nn.softplus(dbc[:, :D_INNER] + b_dt)          # (32, 64) f32
    bt = jnp.transpose(dbc[:, D_INNER:D_INNER + D_STATE])  # (8, 32)
    ccoef = dbc[:, D_INNER + D_STATE:D_INNER + 2 * D_STATE]  # (32, 8)

    # ---- precompute decay = exp(dt * A): one batched exp, off the recurrence ----
    for r in range(BL):
        decay_ref[r * D_STATE:(r + 1) * D_STATE, :] = dt[r:r + 1, :] * a_full
    decay_ref[...] = jnp.exp(decay_ref[...])               # (256, 64) in one pass

    dtx = dt * xc                                          # (32, 64)

    # ---- selective scan: fully unrolled, exp-free body, per-batch states ----
    h0 = jnp.zeros((D_STATE, D_INNER), jnp.float32)
    h1 = jnp.zeros((D_STATE, D_INNER), jnp.float32)
    for t in range(L):
        u = L + t
        h0 = (decay_ref[t * D_STATE:(t + 1) * D_STATE, :] * h0
              + bt[:, t:t + 1] * dtx[t:t + 1, :])
        h1 = (decay_ref[u * D_STATE:(u + 1) * D_STATE, :] * h1
              + bt[:, u:u + 1] * dtx[u:u + 1, :])
        h_ref[t * D_STATE:(t + 1) * D_STATE, :] = h0
        h_ref[u * D_STATE:(u + 1) * D_STATE, :] = h1

    # ---- batched C contraction after the scan (no per-step reduce/concat) ----
    y = ccoef[:, 0:1] * h_ref[pl.ds(0, BL, stride=D_STATE), :]
    for s in range(1, D_STATE):
        y = y + ccoef[:, s:s + 1] * h_ref[pl.ds(s, BL, stride=D_STATE), :]

    # ---- skip term, SiLU gate, fused (out_proj@head | head) matmul ----
    y = y + d_skip * xc
    y = y * (z * jax.nn.sigmoid(z))
    yxm = jnp.concatenate([y, xm], axis=1)                 # (32, 96)
    out_ref[...] = jnp.dot(yxm.astype(jnp.bfloat16), w_ref[_W_OH0:, :],
                           preferred_element_type=jnp.float32)


def init_params(key):
    ks = jax.random.split(key, 8)

    def n(k, shape, s=0.1):
        return jax.random.normal(k, shape, jnp.float32) * s

    return dict(
        ln_g=jnp.ones((1, D_MODEL), jnp.float32),
        ln_b=jnp.zeros((1, D_MODEL), jnp.float32),
        w_in=n(ks[0], (D_MODEL, 2 * D_INNER)),
        conv_w=n(ks[1], (CONV_K, D_INNER)),
        conv_b=jnp.zeros((1, D_INNER), jnp.float32),
        w_x=n(ks[2], (D_INNER, DT_RANK + 2 * D_STATE)),
        w_dt=n(ks[3], (DT_RANK, D_INNER)),
        b_dt=jnp.full((1, D_INNER), -1.0, jnp.float32),
        a_log=jnp.log(jnp.broadcast_to(
            jnp.arange(1, D_STATE + 1, dtype=jnp.float32)[:, None],
            (D_STATE, D_INNER))),
        d=jnp.ones((1, D_INNER), jnp.float32),
        w_out=n(ks[4], (D_INNER, D_MODEL)),
        w_head=n(ks[5], (D_MODEL, P_OUT)),
        # SNR embedding MLP (glue, tiny)
        snr_w1=n(ks[6], (1, 16), 0.5),
        snr_b1=jnp.zeros((1, 16), jnp.float32),
        snr_w2=n(ks[7], (16, D_MODEL), 0.5),
        snr_b2=jnp.zeros((1, D_MODEL), jnp.float32),
    )


@jax.jit
def mamba_decoder_forward(feature, snr, params):
    # feature: (B, L, D_MODEL) float32, snr: scalar (SNR in dB)
    snr_in = jnp.asarray(snr, jnp.float32).reshape(1, 1)
    h1 = jnp.tanh(snr_in @ params["snr_w1"] + params["snr_b1"])
    scale = jax.nn.sigmoid(h1 @ params["snr_w2"] + params["snr_b2"])   # (1, 32)

    # ---- wrapper-side constant folding (tiny, once under jit) ----
    w_in_f = params["w_in"] * jnp.transpose(params["ln_g"])    # diag(ln_g) @ w_in
    b_in_f = params["ln_b"] @ params["w_in"]                   # (1, 128)
    a_neg = -jnp.exp(params["a_log"])                          # (8, 64)

    # fused SSM projection weight: [w_x[:, :R] @ w_dt | B cols | C cols | pad]
    w_dtfold = params["w_x"][:, :DT_RANK] @ params["w_dt"]     # (64, 64)
    w_ssm = jnp.concatenate(
        [w_dtfold, params["w_x"][:, DT_RANK:],
         jnp.zeros((D_INNER, P_PAD - D_INNER - 2 * D_STATE), jnp.float32)],
        axis=1)                                                # (64, 128)

    # fused output weight: [w_out @ w_head ; w_head], zero-padded to 128 lanes
    w_oh = jnp.pad(params["w_out"] @ params["w_head"],
                   ((0, 0), (0, P_PAD - P_OUT)))               # (64, 128)
    w_head_pad = jnp.pad(params["w_head"], ((0, 0), (0, P_PAD - P_OUT)))  # (32,128)
    w_outhead = jnp.concatenate([w_oh, w_head_pad], axis=0)    # (96, 128)

    # single bf16 weight slab (192, 128)
    w_slab = jnp.concatenate([w_in_f, w_ssm, w_outhead],
                             axis=0).astype(jnp.bfloat16)

    # single f32 parameter slab (24, 128)
    def padlane(a):
        return jnp.pad(a, ((0, 0), (0, P_PAD - a.shape[1])))

    p_slab = jnp.concatenate([
        padlane(scale),                       # row 0
        b_in_f,                               # row 1
        padlane(params["conv_b"]),            # row 2
        padlane(params["b_dt"]),              # row 3
        padlane(params["d"]),                 # row 4
        jnp.zeros((3, P_PAD), jnp.float32),   # rows 5-7
        padlane(params["conv_w"]),            # rows 8-11
        jnp.zeros((4, P_PAD), jnp.float32),   # rows 12-15
        padlane(a_neg),                       # rows 16-23
    ], axis=0)

    x_flat = feature.reshape(BL, D_MODEL)                      # batch-major rows

    out = pl.pallas_call(
        _mamba_decoder_kernel,
        out_shape=jax.ShapeDtypeStruct((BL, P_PAD), jnp.float32),
        scratch_shapes=[
            pltpu.VMEM((BL * D_STATE, D_INNER), jnp.float32),  # decay = exp(dt*A)
            pltpu.VMEM((BL * D_STATE, D_INNER), jnp.float32),  # h_t state history
        ],
    )(x_flat, w_slab, p_slab)

    # glue: drop lane padding, token patches -> NCHW image
    img = out[:, :P_OUT].reshape(B, GH, GW, 3, PATCH, PATCH)
    img = img.transpose(0, 3, 1, 4, 2, 5).reshape(B, 3, H, W)
    return img


if __name__ == "__main__":
    key = jax.random.PRNGKey(0)
    pkey, fkey = jax.random.split(key)
    params = init_params(pkey)
    feature = jax.random.normal(fkey, (B, L, D_MODEL), jnp.float32)
    snr = 10  # SNR in dB

    img = mamba_decoder_forward(feature, snr, params)
    jax.block_until_ready(img)

    assert img.shape == (B, 3, H, W), img.shape
    assert bool(jnp.all(jnp.isfinite(img)))
    print("KERNEL_OK")
</pallas_src>

<mosaic_0001>
module attributes {stable_mosaic.version = 11 : i64} {
  func.func @_mamba_decoder_kernel(%arg0: memref<32x32xf32, #tpu.memory_space<vmem>>, %arg1: memref<192x128xbf16, #tpu.memory_space<vmem>>, %arg2: memref<24x128xf32, #tpu.memory_space<vmem>>, %arg3: memref<32x128xf32, #tpu.memory_space<vmem>>, %arg4: memref<256x64xf32, #tpu.memory_space<vmem>>, %arg5: memref<256x64xf32, #tpu.memory_space<vmem>>) attributes {dimension_semantics = [], scalar_prefetch = 0 : i64, scratch_operands = 2 : i64, tpu.core_type = #tpu.core_type<tc>} {
    %c0 = arith.constant 0 : index
    %c0_0 = arith.constant 0 : index
    %0 = vector.load %arg2[%c0, %c0_0] : memref<24x128xf32, #tpu.memory_space<vmem>>, vector<24x128xf32>
    %1 = vector.extract_strided_slice %0 {offsets = [0, 0], sizes = [1, 32], strides = [1, 1]} : vector<24x128xf32> to vector<1x32xf32>
    %2 = vector.extract_strided_slice %0 {offsets = [1, 0], sizes = [1, 128], strides = [1, 1]} : vector<24x128xf32> to vector<1x128xf32>
    %3 = vector.extract_strided_slice %0 {offsets = [2, 0], sizes = [1, 64], strides = [1, 1]} : vector<24x128xf32> to vector<1x64xf32>
    %4 = vector.extract_strided_slice %0 {offsets = [3, 0], sizes = [1, 64], strides = [1, 1]} : vector<24x128xf32> to vector<1x64xf32>
    %5 = vector.extract_strided_slice %0 {offsets = [4, 0], sizes = [1, 64], strides = [1, 1]} : vector<24x128xf32> to vector<1x64xf32>
    %6 = vector.extract_strided_slice %0 {offsets = [8, 0], sizes = [4, 64], strides = [1, 1]} : vector<24x128xf32> to vector<4x64xf32>
    %7 = vector.extract_strided_slice %0 {offsets = [16, 0], sizes = [8, 64], strides = [1, 1]} : vector<24x128xf32> to vector<8x64xf32>
    %c0_1 = arith.constant 0 : index
    %c0_2 = arith.constant 0 : index
    %8 = vector.load %arg0[%c0_1, %c0_2] : memref<32x32xf32, #tpu.memory_space<vmem>>, vector<32x32xf32>
    %9 = vector.broadcast %1 : vector<1x32xf32> to vector<32x32xf32>
    %10 = arith.mulf %8, %9 : vector<32x32xf32>
    %cst = arith.constant dense<0.000000e+00> : vector<32xf32>
    %11 = vector.multi_reduction <add>, %10, %cst [1] : vector<32x32xf32> to vector<32xf32>
    %12 = vector.shape_cast %11 : vector<32xf32> to vector<32x1xf32>
    %cst_3 = arith.constant 3.200000e+01 : f32
    %13 = vector.broadcast %cst_3 : f32 to vector<32x1xf32>
    %14 = arith.divf %12, %13 : vector<32x1xf32>
    %15 = vector.broadcast %14 : vector<32x1xf32> to vector<32x32xf32>
    %16 = arith.subf %10, %15 : vector<32x32xf32>
    %17 = arith.mulf %16, %16 : vector<32x32xf32>
    %cst_4 = arith.constant dense<0.000000e+00> : vector<32xf32>
    %18 = vector.multi_reduction <add>, %17, %cst_4 [1] : vector<32x32xf32> to vector<32xf32>
    %19 = vector.shape_cast %18 : vector<32xf32> to vector<32x1xf32>
    %cst_5 = arith.constant 3.200000e+01 : f32
    %20 = vector.broadcast %cst_5 : f32 to vector<32x1xf32>
    %21 = arith.divf %19, %20 : vector<32x1xf32>
    %22 = vector.broadcast %14 : vector<32x1xf32> to vector<32x32xf32>
    %23 = arith.subf %10, %22 : vector<32x32xf32>
    %cst_6 = arith.constant 9.99999974E-6 : f32
    %24 = vector.broadcast %cst_6 : f32 to vector<32x1xf32>
    %25 = arith.addf %21, %24 : vector<32x1xf32>
    %26 = math.rsqrt %25 : vector<32x1xf32>
    %27 = vector.broadcast %26 : vector<32x1xf32> to vector<32x32xf32>
    %28 = arith.mulf %23, %27 : vector<32x32xf32>
    %29 = arith.truncf %28 : vector<32x32xf32> to vector<32x32xbf16>
    %c0_7 = arith.constant 0 : index
    %c0_8 = arith.constant 0 : index
    %30 = vector.load %arg1[%c0_7, %c0_8] : memref<192x128xbf16, #tpu.memory_space<vmem>>, vector<32x128xbf16>
    %cst_9 = arith.constant dense<0.000000e+00> : vector<32x128xf32>
    %31 = tpu.matmul %29, %30, %cst_9 {dimension_numbers = #tpu.dot_dimension_numbers<[1], [0], [0], [1], [0, 0, 1, 1], [], []>} : vector<32x32xbf16>, vector<32x128xbf16>, vector<32x128xf32> -> vector<32x128xf32>
    %32 = vector.broadcast %2 : vector<1x128xf32> to vector<32x128xf32>
    %33 = arith.addf %31, %32 : vector<32x128xf32>
    %34 = vector.extract_strided_slice %33 {offsets = [0, 0], sizes = [32, 64], strides = [1, 1]} : vector<32x128xf32> to vector<32x64xf32>
    %35 = vector.extract_strided_slice %33 {offsets = [0, 64], sizes = [32, 64], strides = [1, 1]} : vector<32x128xf32> to vector<32x64xf32>
    %36 = tpu.iota {dimensions = array<i32: 0>} : vector<32x64xi32>
    %c16_i32 = arith.constant 16 : i32
    %37 = vector.broadcast %c16_i32 : i32 to vector<32x64xi32>
    %38 = arith.cmpi sge, %36, %37 : vector<32x64xi32>
    %c16_i32_10 = arith.constant 16 : i32
    %39 = vector.broadcast %c16_i32_10 : i32 to vector<32x64xi32>
    %40 = arith.subi %36, %39 : vector<32x64xi32>
    %41 = arith.select %38, %40, %36 : vector<32x64xi1>, vector<32x64xi32>
    %42 = vector.extract_strided_slice %6 {offsets = [3, 0], sizes = [1, 64], strides = [1, 1]} : vector<4x64xf32> to vector<1x64xf32>
    %43 = vector.broadcast %42 : vector<1x64xf32> to vector<32x64xf32>
    %44 = arith.mulf %43, %34 : vector<32x64xf32>
    %c3_i32 = arith.constant 3 : i32
    %45 = tpu.dynamic_rotate %34 by %c3_i32 dim 0 : vector<32x64xf32>, i32 -> vector<32x64xf32>
    %c3_i32_11 = arith.constant 3 : i32
    %46 = vector.broadcast %c3_i32_11 : i32 to vector<32x64xi32>
    %47 = arith.cmpi sge, %41, %46 : vector<32x64xi32>
    %cst_12 = arith.constant 0.000000e+00 : f32
    %48 = vector.broadcast %cst_12 : f32 to vector<32x64xf32>
    %49 = arith.select %47, %45, %48 : vector<32x64xi1>, vector<32x64xf32>
    %50 = vector.extract_strided_slice %6 {offsets = [0, 0], sizes = [1, 64], strides = [1, 1]} : vector<4x64xf32> to vector<1x64xf32>
    %51 = vector.broadcast %50 : vector<1x64xf32> to vector<32x64xf32>
    %52 = arith.mulf %51, %49 : vector<32x64xf32>
    %53 = arith.addf %44, %52 : vector<32x64xf32>
    %c2_i32 = arith.constant 2 : i32
    %54 = tpu.dynamic_rotate %34 by %c2_i32 dim 0 : vector<32x64xf32>, i32 -> vector<32x64xf32>
    %c2_i32_13 = arith.constant 2 : i32
    %55 = vector.broadcast %c2_i32_13 : i32 to vector<32x64xi32>
    %56 = arith.cmpi sge, %41, %55 : vector<32x64xi32>
    %cst_14 = arith.constant 0.000000e+00 : f32
    %57 = vector.broadcast %cst_14 : f32 to vector<32x64xf32>
    %58 = arith.select %56, %54, %57 : vector<32x64xi1>, vector<32x64xf32>
    %59 = vector.extract_strided_slice %6 {offsets = [1, 0], sizes = [1, 64], strides = [1, 1]} : vector<4x64xf32> to vector<1x64xf32>
    %60 = vector.broadcast %59 : vector<1x64xf32> to vector<32x64xf32>
    %61 = arith.mulf %60, %58 : vector<32x64xf32>
    %62 = arith.addf %53, %61 : vector<32x64xf32>
    %c1_i32 = arith.constant 1 : i32
    %63 = tpu.dynamic_rotate %34 by %c1_i32 dim 0 : vector<32x64xf32>, i32 -> vector<32x64xf32>
    %c1_i32_15 = arith.constant 1 : i32
    %64 = vector.broadcast %c1_i32_15 : i32 to vector<32x64xi32>
    %65 = arith.cmpi sge, %41, %64 : vector<32x64xi32>
    %cst_16 = arith.constant 0.000000e+00 : f32
    %66 = vector.broadcast %cst_16 : f32 to vector<32x64xf32>
    %67 = arith.select %65, %63, %66 : vector<32x64xi1>, vector<32x64xf32>
    %68 = vector.extract_strided_slice %6 {offsets = [2, 0], sizes = [1, 64], strides = [1, 1]} : vector<4x64xf32> to vector<1x64xf32>
    %69 = vector.broadcast %68 : vector<1x64xf32> to vector<32x64xf32>
    %70 = arith.mulf %69, %67 : vector<32x64xf32>
    %71 = arith.addf %62, %70 : vector<32x64xf32>
    %72 = vector.broadcast %3 : vector<1x64xf32> to vector<32x64xf32>
    %73 = arith.addf %71, %72 : vector<32x64xf32>
    %74 = arith.negf %73 : vector<32x64xf32>
    %75 = math.exp %74 : vector<32x64xf32>
    %cst_17 = arith.constant 1.000000e+00 : f32
    %76 = vector.broadcast %cst_17 : f32 to vector<32x64xf32>
    %77 = arith.addf %76, %75 : vector<32x64xf32>
    %78 = arith.divf %76, %77 : vector<32x64xf32>
    %79 = arith.mulf %73, %78 : vector<32x64xf32>
    %80 = arith.truncf %79 : vector<32x64xf32> to vector<32x64xbf16>
    %c32 = arith.constant 32 : index
    %c0_18 = arith.constant 0 : index
    %81 = vector.load %arg1[%c32, %c0_18] : memref<192x128xbf16, #tpu.memory_space<vmem>>, vector<64x128xbf16>
    %cst_19 = arith.constant dense<0.000000e+00> : vector<32x128xf32>
    %82 = tpu.matmul %80, %81, %cst_19 {dimension_numbers = #tpu.dot_dimension_numbers<[1], [0], [0], [1], [0, 0, 1, 1], [], []>} : vector<32x64xbf16>, vector<64x128xbf16>, vector<32x128xf32> -> vector<32x128xf32>
    %83 = vector.extract_strided_slice %82 {offsets = [0, 0], sizes = [32, 64], strides = [1, 1]} : vector<32x128xf32> to vector<32x64xf32>
    %84 = vector.broadcast %4 : vector<1x64xf32> to vector<32x64xf32>
    %85 = arith.addf %83, %84 : vector<32x64xf32>
    %cst_20 = arith.constant 0.000000e+00 : f32
    %86 = vector.broadcast %cst_20 : f32 to vector<32x64xf32>
    %87 = arith.maximumf %85, %86 : vector<32x64xf32>
    %88 = vector.broadcast %cst_20 : f32 to vector<32x64xf32>
    %89 = arith.subf %85, %88 : vector<32x64xf32>
    %90 = arith.cmpf one, %89, %89 : vector<32x64xf32>
    %91 = vector.broadcast %cst_20 : f32 to vector<32x64xf32>
    %92 = arith.addf %85, %91 : vector<32x64xf32>
    %93 = math.absf %89 : vector<32x64xf32>
    %cst_21 = arith.constant 0.000000e+00 : f32
    %94 = vector.broadcast %cst_21 : f32 to vector<32x64xf32>
    %95 = arith.subf %94, %93 : vector<32x64xf32>
    %96 = math.exp %95 : vector<32x64xf32>
    %97 = math.log1p %96 : vector<32x64xf32>
    %98 = arith.addf %87, %97 : vector<32x64xf32>
    %99 = arith.select %90, %92, %98 : vector<32x64xi1>, vector<32x64xf32>
    %100 = vector.extract_strided_slice %82 {offsets = [0, 64], sizes = [32, 8], strides = [1, 1]} : vector<32x128xf32> to vector<32x8xf32>
    %101 = tpu.transpose %100, [1, 0] : vector<32x8xf32> -> vector<8x32xf32>
    %102 = vector.extract_strided_slice %82 {offsets = [0, 72], sizes = [32, 8], strides = [1, 1]} : vector<32x128xf32> to vector<32x8xf32>
    %103 = vector.extract_strided_slice %99 {offsets = [0, 0], sizes = [1, 64], strides = [1, 1]} : vector<32x64xf32> to vector<1x64xf32>
    %104 = vector.broadcast %103 : vector<1x64xf32> to vector<8x64xf32>
    %105 = arith.mulf %104, %7 : vector<8x64xf32>
    %c0_22 = arith.constant 0 : index
    %c0_23 = arith.constant 0 : index
    %106 = vector.load %arg4[%c0_22, %c0_23] : memref<256x64xf32, #tpu.memory_space<vmem>>, vector<8x64xf32>
    tpu.vector_store %arg4[%c0_22, %c0_23], %105 {strides = array<i32>} : memref<256x64xf32, #tpu.memory_space<vmem>>, vector<8x64xf32>,
    %107 = vector.extract_strided_slice %99 {offsets = [1, 0], sizes = [1, 64], strides = [1, 1]} : vector<32x64xf32> to vector<1x64xf32>
    %108 = vector.broadcast %107 : vector<1x64xf32> to vector<8x64xf32>
    %109 = arith.mulf %108, %7 : vector<8x64xf32>
    %c8 = arith.constant 8 : index
    %c0_24 = arith.constant 0 : index
    %110 = vector.load %arg4[%c8, %c0_24] : memref<256x64xf32, #tpu.memory_space<vmem>>, vector<8x64xf32>
    tpu.vector_store %arg4[%c8, %c0_24], %109 {strides = array<i32>} : memref<256x64xf32, #tpu.memory_space<vmem>>, vector<8x64xf32>,
    %111 = vector.extract_strided_slice %99 {offsets = [2, 0], sizes = [1, 64], strides = [1, 1]} : vector<32x64xf32> to vector<1x64xf32>
    %112 = vector.broadcast %111 : vector<1x64xf32> to vector<8x64xf32>
    %113 = arith.mulf %112, %7 : vector<8x64xf32>
    %c16 = arith.constant 16 : index
    %c0_25 = arith.constant 0 : index
    %114 = vector.load %arg4[%c16, %c0_25] : memref<256x64xf32, #tpu.memory_space<vmem>>, vector<8x64xf32>
    tpu.vector_store %arg4[%c16, %c0_25], %113 {strides = array<i32>} : memref<256x64xf32, #tpu.memory_space<vmem>>, vector<8x64xf32>,
    %115 = vector.extract_strided_slice %99 {offsets = [3, 0], sizes = [1, 64], strides = [1, 1]} : vector<32x64xf32> to vector<1x64xf32>
    %116 = vector.broadcast %115 : vector<1x64xf32> to vector<8x64xf32>
    %117 = arith.mulf %116, %7 : vector<8x64xf32>
    %c24 = arith.constant 24 : index
    %c0_26 = arith.constant 0 : index
    %118 = vector.load %arg4[%c24, %c0_26] : memref<256x64xf32, #tpu.memory_space<vmem>>, vector<8x64xf32>
    tpu.vector_store %arg4[%c24, %c0_26], %117 {strides = array<i32>} : memref<256x64xf32, #tpu.memory_space<vmem>>, vector<8x64xf32>,
    %119 = vector.extract_strided_slice %99 {offsets = [4, 0], sizes = [1, 64], strides = [1, 1]} : vector<32x64xf32> to vector<1x64xf32>
    %120 = vector.broadcast %119 : vector<1x64xf32> to vector<8x64xf32>
    %121 = arith.mulf %120, %7 : vector<8x64xf32>
    %c32_27 = arith.constant 32 : index
    %c0_28 = arith.constant 0 : index
    %122 = vector.load %arg4[%c32_27, %c0_28] : memref<256x64xf32, #tpu.memory_space<vmem>>, vector<8x64xf32>
    tpu.vector_store %arg4[%c32_27, %c0_28], %121 {strides = array<i32>} : memref<256x64xf32, #tpu.memory_space<vmem>>, vector<8x64xf32>,
    %123 = vector.extract_strided_slice %99 {offsets = [5, 0], sizes = [1, 64], strides = [1, 1]} : vector<32x64xf32> to vector<1x64xf32>
    %124 = vector.broadcast %123 : vector<1x64xf32> to vector<8x64xf32>
    %125 = arith.mulf %124, %7 : vector<8x64xf32>
    %c40 = arith.constant 40 : index
    %c0_29 = arith.constant 0 : index
    %126 = vector.load %arg4[%c40, %c0_29] : memref<256x64xf32, #tpu.memory_space<vmem>>, vector<8x64xf32>
    tpu.vector_store %arg4[%c40, %c0_29], %125 {strides = array<i32>} : memref<256x64xf32, #tpu.memory_space<vmem>>, vector<8x64xf32>,
    %127 = vector.extract_strided_slice %99 {offsets = [6, 0], sizes = [1, 64], strides = [1, 1]} : vector<32x64xf32> to vector<1x64xf32>
    %128 = vector.broadcast %127 : vector<1x64xf32> to vector<8x64xf32>
    %129 = arith.mulf %128, %7 : vector<8x64xf32>
    %c48 = arith.constant 48 : index
    %c0_30 = arith.constant 0 : index
    %130 = vector.load %arg4[%c48, %c0_30] : memref<256x64xf32, #tpu.memory_space<vmem>>, vector<8x64xf32>
    tpu.vector_store %arg4[%c48, %c0_30], %129 {strides = array<i32>} : memref<256x64xf32, #tpu.memory_space<vmem>>, vector<8x64xf32>,
    %131 = vector.extract_strided_slice %99 {offsets = [7, 0], sizes = [1, 64], strides = [1, 1]} : vector<32x64xf32> to vector<1x64xf32>
    %132 = vector.broadcast %131 : vector<1x64xf32> to vector<8x64xf32>
    %133 = arith.mulf %132, %7 : vector<8x64xf32>
    %c56 = arith.constant 56 : index
    %c0_31 = arith.constant 0 : index
    %134 = vector.load %arg4[%c56, %c0_31] : memref<256x64xf32, #tpu.memory_space<vmem>>, vector<8x64xf32>
    tpu.vector_store %arg4[%c56, %c0_31], %133 {strides = array<i32>} : memref<256x64xf32, #tpu.memory_space<vmem>>, vector<8x64xf32>,
    %135 = vector.extract_strided_slice %99 {offsets = [8, 0], sizes = [1, 64], strides = [1, 1]} : vector<32x64xf32> to vector<1x64xf32>
    %136 = vector.broadcast %135 : vector<1x64xf32> to vector<8x64xf32>
    %137 = arith.mulf %136, %7 : vector<8x64xf32>
    %c64 = arith.constant 64 : index
    %c0_32 = arith.constant 0 : index
    %138 = vector.load %arg4[%c64, %c0_32] : memref<256x64xf32, #tpu.memory_space<vmem>>, vector<8x64xf32>
    tpu.vector_store %arg4[%c64, %c0_32], %137 {strides = array<i32>} : memref<256x64xf32, #tpu.memory_space<vmem>>, vector<8x64xf32>,
    %139 = vector.extract_strided_slice %99 {offsets = [9, 0], sizes = [1, 64], strides = [1, 1]} : vector<32x64xf32> to vector<1x64xf32>
    %140 = vector.broadcast %139 : vector<1x64xf32> to vector<8x64xf32>
    %141 = arith.mulf %140, %7 : vector<8x64xf32>
    %c72 = arith.constant 72 : index
    %c0_33 = arith.constant 0 : index
    %142 = vector.load %arg4[%c72, %c0_33] : memref<256x64xf32, #tpu.memory_space<vmem>>, vector<8x64xf32>
    tpu.vector_store %arg4[%c72, %c0_33], %141 {strides = array<i32>} : memref<256x64xf32, #tpu.memory_space<vmem>>, vector<8x64xf32>,
    %143 = vector.extract_strided_slice %99 {offsets = [10, 0], sizes = [1, 64], strides = [1, 1]} : vector<32x64xf32> to vector<1x64xf32>
    %144 = vector.broadcast %143 : vector<1x64xf32> to vector<8x64xf32>
    %145 = arith.mulf %144, %7 : vector<8x64xf32>
    %c80 = arith.constant 80 : index
    %c0_34 = arith.constant 0 : index
    %146 = vector.load %arg4[%c80, %c0_34] : memref<256x64xf32, #tpu.memory_space<vmem>>, vector<8x64xf32>
    tpu.vector_store %arg4[%c80, %c0_34], %145 {strides = array<i32>} : memref<256x64xf32, #tpu.memory_space<vmem>>, vector<8x64xf32>,
    %147 = vector.extract_strided_slice %99 {offsets = [11, 0], sizes = [1, 64], strides = [1, 1]} : vector<32x64xf32> to vector<1x64xf32>
    %148 = vector.broadcast %147 : vector<1x64xf32> to vector<8x64xf32>
    %149 = arith.mulf %148, %7 : vector<8x64xf32>
    %c88 = arith.constant 88 : index
    %c0_35 = arith.constant 0 : index
    %150 = vector.load %arg4[%c88, %c0_35] : memref<256x64xf32, #tpu.memory_space<vmem>>, vector<8x64xf32>
    tpu.vector_store %arg4[%c88, %c0_35], %149 {strides = array<i32>} : memref<256x64xf32, #tpu.memory_space<vmem>>, vector<8x64xf32>,
    %151 = vector.extract_strided_slice %99 {offsets = [12, 0], sizes = [1, 64], strides = [1, 1]} : vector<32x64xf32> to vector<1x64xf32>
    %152 = vector.broadcast %151 : vector<1x64xf32> to vector<8x64xf32>
    %153 = arith.mulf %152, %7 : vector<8x64xf32>
    %c96 = arith.constant 96 : index
    %c0_36 = arith.constant 0 : index
    %154 = vector.load %arg4[%c96, %c0_36] : memref<256x64xf32, #tpu.memory_space<vmem>>, vector<8x64xf32>
    tpu.vector_store %arg4[%c96, %c0_36], %153 {strides = array<i32>} : memref<256x64xf32, #tpu.memory_space<vmem>>, vector<8x64xf32>,
    %155 = vector.extract_strided_slice %99 {offsets = [13, 0], sizes = [1, 64], strides = [1, 1]} : vector<32x64xf32> to vector<1x64xf32>
    %156 = vector.broadcast %155 : vector<1x64xf32> to vector<8x64xf32>
    %157 = arith.mulf %156, %7 : vector<8x64xf32>
    %c104 = arith.constant 104 : index
    %c0_37 = arith.constant 0 : index
    %158 = vector.load %arg4[%c104, %c0_37] : memref<256x64xf32, #tpu.memory_space<vmem>>, vector<8x64xf32>
    tpu.vector_store %arg4[%c104, %c0_37], %157 {strides = array<i32>} : memref<256x64xf32, #tpu.memory_space<vmem>>, vector<8x64xf32>,
    %159 = vector.extract_strided_slice %99 {offsets = [14, 0], sizes = [1, 64], strides = [1, 1]} : vector<32x64xf32> to vector<1x64xf32>
    %160 = vector.broadcast %159 : vector<1x64xf32> to vector<8x64xf32>
    %161 = arith.mulf %160, %7 : vector<8x64xf32>
    %c112 = arith.constant 112 : index
    %c0_38 = arith.constant 0 : index
    %162 = vector.load %arg4[%c112, %c0_38] : memref<256x64xf32, #tpu.memory_space<vmem>>, vector<8x64xf32>
    tpu.vector_store %arg4[%c112, %c0_38], %161 {strides = array<i32>} : memref<256x64xf32, #tpu.memory_space<vmem>>, vector<8x64xf32>,
    %163 = vector.extract_strided_slice %99 {offsets = [15, 0], sizes = [1, 64], strides = [1, 1]} : vector<32x64xf32> to vector<1x64xf32>
    %164 = vector.broadcast %163 : vector<1x64xf32> to vector<8x64xf32>
    %165 = arith.mulf %164, %7 : vector<8x64xf32>
    %c120 = arith.constant 120 : index
    %c0_39 = arith.constant 0 : index
    %166 = vector.load %arg4[%c120, %c0_39] : memref<256x64xf32, #tpu.memory_space<vmem>>, vector<8x64xf32>
    tpu.vector_store %arg4[%c120, %c0_39], %165 {strides = array<i32>} : memref<256x64xf32, #tpu.memory_space<vmem>>, vector<8x64xf32>,
    %167 = vector.extract_strided_slice %99 {offsets = [16, 0], sizes = [1, 64], strides = [1, 1]} : vector<32x64xf32> to vector<1x64xf32>
    %168 = vector.broadcast %167 : vector<1x64xf32> to vector<8x64xf32>
    %169 = arith.mulf %168, %7 : vector<8x64xf32>
    %c128 = arith.constant 128 : index
    %c0_40 = arith.constant 0 : index
    %170 = vector.load %arg4[%c128, %c0_40] : memref<256x64xf32, #tpu.memory_space<vmem>>, vector<8x64xf32>
    tpu.vector_store %arg4[%c128, %c0_40], %169 {strides = array<i32>} : memref<256x64xf32, #tpu.memory_space<vmem>>, vector<8x64xf32>,
    %171 = vector.extract_strided_slice %99 {offsets = [17, 0], sizes = [1, 64], strides = [1, 1]} : vector<32x64xf32> to vector<1x64xf32>
    %172 = vector.broadcast %171 : vector<1x64xf32> to vector<8x64xf32>
    %173 = arith.mulf %172, %7 : vector<8x64xf32>
    %c136 = arith.constant 136 : index
    %c0_41 = arith.constant 0 : index
    %174 = vector.load %arg4[%c136, %c0_41] : memref<256x64xf32, #tpu.memory_space<vmem>>, vector<8x64xf32>
    tpu.vector_store %arg4[%c136, %c0_41], %173 {strides = array<i32>} : memref<256x64xf32, #tpu.memory_space<vmem>>, vector<8x64xf32>,
    %175 = vector.extract_strided_slice %99 {offsets = [18, 0], sizes = [1, 64], strides = [1, 1]} : vector<32x64xf32> to vector<1x64xf32>
    %176 = vector.broadcast %175 : vector<1x64xf32> to vector<8x64xf32>
    %177 = arith.mulf %176, %7 : vector<8x64xf32>
    %c144 = arith.constant 144 : index
    %c0_42 = arith.constant 0 : index
    %178 = vector.load %arg4[%c144, %c0_42] : memref<256x64xf32, #tpu.memory_space<vmem>>, vector<8x64xf32>
    tpu.vector_store %arg4[%c144, %c0_42], %177 {strides = array<i32>} : memref<256x64xf32, #tpu.memory_space<vmem>>, vector<8x64xf32>,
    %179 = vector.extract_strided_slice %99 {offsets = [19, 0], sizes = [1, 64], strides = [1, 1]} : vector<32x64xf32> to vector<1x64xf32>
    %180 = vector.broadcast %179 : vector<1x64xf32> to vector<8x64xf32>
    %181 = arith.mulf %180, %7 : vector<8x64xf32>
    %c152 = arith.constant 152 : index
    %c0_43 = arith.constant 0 : index
    %182 = vector.load %arg4[%c152, %c0_43] : memref<256x64xf32, #tpu.memory_space<vmem>>, vector<8x64xf32>
    tpu.vector_store %arg4[%c152, %c0_43], %181 {strides = array<i32>} : memref<256x64xf32, #tpu.memory_space<vmem>>, vector<8x64xf32>,
    %183 = vector.extract_strided_slice %99 {offsets = [20, 0], sizes = [1, 64], strides = [1, 1]} : vector<32x64xf32> to vector<1x64xf32>
    %184 = vector.broadcast %183 : vector<1x64xf32> to vector<8x64xf32>
    %185 = arith.mulf %184, %7 : vector<8x64xf32>
    %c160 = arith.constant 160 : index
    %c0_44 = arith.constant 0 : index
    %186 = vector.load %arg4[%c160, %c0_44] : memref<256x64xf32, #tpu.memory_space<vmem>>, vector<8x64xf32>
    tpu.vector_store %arg4[%c160, %c0_44], %185 {strides = array<i32>} : memref<256x64xf32, #tpu.memory_space<vmem>>, vector<8x64xf32>,
    %187 = vector.extract_strided_slice %99 {offsets = [21, 0], sizes = [1, 64], strides = [1, 1]} : vector<32x64xf32> to vector<1x64xf32>
    %188 = vector.broadcast %187 : vector<1x64xf32> to vector<8x64xf32>
    %189 = arith.mulf %188, %7 : vector<8x64xf32>
    %c168 = arith.constant 168 : index
    %c0_45 = arith.constant 0 : index
    %190 = vector.load %arg4[%c168, %c0_45] : memref<256x64xf32, #tpu.memory_space<vmem>>, vector<8x64xf32>
    tpu.vector_store %arg4[%c168, %c0_45], %189 {strides = array<i32>} : memref<256x64xf32, #tpu.memory_space<vmem>>, vector<8x64xf32>,
    %191 = vector.extract_strided_slice %99 {offsets = [22, 0], sizes = [1, 64], strides = [1, 1]} : vector<32x64xf32> to vector<1x64xf32>
    %192 = vector.broadcast %191 : vector<1x64xf32> to vector<8x64xf32>
    %193 = arith.mulf %192, %7 : vector<8x64xf32>
    %c176 = arith.constant 176 : index
    %c0_46 = arith.constant 0 : index
    %194 = vector.load %arg4[%c176, %c0_46] : memref<256x64xf32, #tpu.memory_space<vmem>>, vector<8x64xf32>
    tpu.vector_store %arg4[%c176, %c0_46], %193 {strides = array<i32>} : memref<256x64xf32, #tpu.memory_space<vmem>>, vector<8x64xf32>,
    %195 = vector.extract_strided_slice %99 {offsets = [23, 0], sizes = [1, 64], strides = [1, 1]} : vector<32x64xf32> to vector<1x64xf32>
    %196 = vector.broadcast %195 : vector<1x64xf32> to vector<8x64xf32>
    %197 = arith.mulf %196, %7 : vector<8x64xf32>
    %c184 = arith.constant 184 : index
    %c0_47 = arith.constant 0 : index
    %198 = vector.load %arg4[%c184, %c0_47] : memref<256x64xf32, #tpu.memory_space<vmem>>, vector<8x64xf32>
    tpu.vector_store %arg4[%c184, %c0_47], %197 {strides = array<i32>} : memref<256x64xf32, #tpu.memory_space<vmem>>, vector<8x64xf32>,
    %199 = vector.extract_strided_slice %99 {offsets = [24, 0], sizes = [1, 64], strides = [1, 1]} : vector<32x64xf32> to vector<1x64xf32>
    %200 = vector.broadcast %199 : vector<1x64xf32> to vector<8x64xf32>
    %201 = arith.mulf %200, %7 : vector<8x64xf32>
    %c192 = arith.constant 192 : index
    %c0_48 = arith.constant 0 : index
    %202 = vector.load %arg4[%c192, %c0_48] : memref<256x64xf32, #tpu.memory_space<vmem>>, vector<8x64xf32>
    tpu.vector_store %arg4[%c192, %c0_48], %201 {strides = array<i32>} : memref<256x64xf32, #tpu.memory_space<vmem>>, vector<8x64xf32>,
    %203 = vector.extract_strided_slice %99 {offsets = [25, 0], sizes = [1, 64], strides = [1, 1]} : vector<32x64xf32> to vector<1x64xf32>
    %204 = vector.broadcast %203 : vector<1x64xf32> to vector<8x64xf32>
    %205 = arith.mulf %204, %7 : vector<8x64xf32>
    %c200 = arith.constant 200 : index
    %c0_49 = arith.constant 0 : index
    %206 = vector.load %arg4[%c200, %c0_49] : memref<256x64xf32, #tpu.memory_space<vmem>>, vector<8x64xf32>
    tpu.vector_store %arg4[%c200, %c0_49], %205 {strides = array<i32>} : memref<256x64xf32, #tpu.memory_space<vmem>>, vector<8x64xf32>,
    %207 = vector.extract_strided_slice %99 {offsets = [26, 0], sizes = [1, 64], strides = [1, 1]} : vector<32x64xf32> to vector<1x64xf32>
    %208 = vector.broadcast %207 : vector<1x64xf32> to vector<8x64xf32>
    %209 = arith.mulf %208, %7 : vector<8x64xf32>
    %c208 = arith.constant 208 : index
    %c0_50 = arith.constant 0 : index
    %210 = vector.load %arg4[%c208, %c0_50] : memref<256x64xf32, #tpu.memory_space<vmem>>, vector<8x64xf32>
    tpu.vector_store %arg4[%c208, %c0_50], %209 {strides = array<i32>} : memref<256x64xf32, #tpu.memory_space<vmem>>, vector<8x64xf32>,
    %211 = vector.extract_strided_slice %99 {offsets = [27, 0], sizes = [1, 64], strides = [1, 1]} : vector<32x64xf32> to vector<1x64xf32>
    %212 = vector.broadcast %211 : vector<1x64xf32> to vector<8x64xf32>
    %213 = arith.mulf %212, %7 : vector<8x64xf32>
    %c216 = arith.constant 216 : index
    %c0_51 = arith.constant 0 : index
    %214 = vector.load %arg4[%c216, %c0_51] : memref<256x64xf32, #tpu.memory_space<vmem>>, vector<8x64xf32>
    tpu.vector_store %arg4[%c216, %c0_51], %213 {strides = array<i32>} : memref<256x64xf32, #tpu.memory_space<vmem>>, vector<8x64xf32>,
    %215 = vector.extract_strided_slice %99 {offsets = [28, 0], sizes = [1, 64], strides = [1, 1]} : vector<32x64xf32> to vector<1x64xf32>
    %216 = vector.broadcast %215 : vector<1x64xf32> to vector<8x64xf32>
    %217 = arith.mulf %216, %7 : vector<8x64xf32>
    %c224 = arith.constant 224 : index
    %c0_52 = arith.constant 0 : index
    %218 = vector.load %arg4[%c224, %c0_52] : memref<256x64xf32, #tpu.memory_space<vmem>>, vector<8x64xf32>
    tpu.vector_store %arg4[%c224, %c0_52], %217 {strides = array<i32>} : memref<256x64xf32, #tpu.memory_space<vmem>>, vector<8x64xf32>,
    %219 = vector.extract_strided_slice %99 {offsets = [29, 0], sizes = [1, 64], strides = [1, 1]} : vector<32x64xf32> to vector<1x64xf32>
    %220 = vector.broadcast %219 : vector<1x64xf32> to vector<8x64xf32>
    %221 = arith.mulf %220, %7 : vector<8x64xf32>
    %c232 = arith.constant 232 : index
    %c0_53 = arith.constant 0 : index
    %222 = vector.load %arg4[%c232, %c0_53] : memref<256x64xf32, #tpu.memory_space<vmem>>, vector<8x64xf32>
    tpu.vector_store %arg4[%c232, %c0_53], %221 {strides = array<i32>} : memref<256x64xf32, #tpu.memory_space<vmem>>, vector<8x64xf32>,
    %223 = vector.extract_strided_slice %99 {offsets = [30, 0], sizes = [1, 64], strides = [1, 1]} : vector<32x64xf32> to vector<1x64xf32>
    %224 = vector.broadcast %223 : vector<1x64xf32> to vector<8x64xf32>
    %225 = arith.mulf %224, %7 : vector<8x64xf32>
    %c240 = arith.constant 240 : index
    %c0_54 = arith.constant 0 : index
    %226 = vector.load %arg4[%c240, %c0_54] : memref<256x64xf32, #tpu.memory_space<vmem>>, vector<8x64xf32>
    tpu.vector_store %arg4[%c240, %c0_54], %225 {strides = array<i32>} : memref<256x64xf32, #tpu.memory_space<vmem>>, vector<8x64xf32>,
    %227 = vector.extract_strided_slice %99 {offsets = [31, 0], sizes = [1, 64], strides = [1, 1]} : vector<32x64xf32> to vector<1x64xf32>
    %228 = vector.broadcast %227 : vector<1x64xf32> to vector<8x64xf32>
    %229 = arith.mulf %228, %7 : vector<8x64xf32>
    %c248 = arith.constant 248 : index
    %c0_55 = arith.constant 0 : index
    %230 = vector.load %arg4[%c248, %c0_55] : memref<256x64xf32, #tpu.memory_space<vmem>>, vector<8x64xf32>
    tpu.vector_store %arg4[%c248, %c0_55], %229 {strides = array<i32>} : memref<256x64xf32, #tpu.memory_space<vmem>>, vector<8x64xf32>,
    %c0_56 = arith.constant 0 : index
    %c0_57 = arith.constant 0 : index
    %231 = vector.load %arg4[%c0_56, %c0_57] : memref<256x64xf32, #tpu.memory_space<vmem>>, vector<256x64xf32>
    %232 = math.exp %231 : vector<256x64xf32>
    %c0_58 = arith.constant 0 : index
    %c0_59 = arith.constant 0 : index
    %233 = vector.load %arg4[%c0_58, %c0_59] : memref<256x64xf32, #tpu.memory_space<vmem>>, vector<256x64xf32>
    tpu.vector_store %arg4[%c0_58, %c0_59], %232 {strides = array<i32>} : memref<256x64xf32, #tpu.memory_space<vmem>>, vector<256x64xf32>,
    %234 = arith.mulf %99, %79 : vector<32x64xf32>
    %cst_60 = arith.constant 0.000000e+00 : f32
    %235 = vector.broadcast %cst_60 : f32 to vector<8x64xf32>
    %cst_61 = arith.constant 0.000000e+00 : f32
    %236 = vector.broadcast %cst_61 : f32 to vector<8x64xf32>
    %c0_62 = arith.constant 0 : index
    %c0_63 = arith.constant 0 : index
    %237 = vector.load %arg4[%c0_62, %c0_63] : memref<256x64xf32, #tpu.memory_space<vmem>>, vector<8x64xf32>
    %238 = arith.mulf %237, %235 : vector<8x64xf32>
    %239 = vector.extract_strided_slice %101 {offsets = [0, 0], sizes = [8, 1], strides = [1, 1]} : vector<8x32xf32> to vector<8x1xf32>
    %240 = vector.extract_strided_slice %234 {offsets = [0, 0], sizes = [1, 64], strides = [1, 1]} : vector<32x64xf32> to vector<1x64xf32>
    %241 = vector.broadcast %239 : vector<8x1xf32> to vector<8x64xf32>
    %242 = vector.broadcast %240 : vector<1x64xf32> to vector<8x64xf32>
    %243 = arith.mulf %241, %242 : vector<8x64xf32>
    %244 = arith.addf %238, %243 : vector<8x64xf32>
    %c128_64 = arith.constant 128 : index
    %c0_65 = arith.constant 0 : index
    %245 = vector.load %arg4[%c128_64, %c0_65] : memref<256x64xf32, #tpu.memory_space<vmem>>, vector<8x64xf32>
    %246 = arith.mulf %245, %236 : vector<8x64xf32>
    %247 = vector.extract_strided_slice %101 {offsets = [0, 16], sizes = [8, 1], strides = [1, 1]} : vector<8x32xf32> to vector<8x1xf32>
    %248 = vector.extract_strided_slice %234 {offsets = [16, 0], sizes = [1, 64], strides = [1, 1]} : vector<32x64xf32> to vector<1x64xf32>
    %249 = vector.broadcast %247 : vector<8x1xf32> to vector<8x64xf32>
    %250 = vector.broadcast %248 : vector<1x64xf32> to vector<8x64xf32>
    %251 = arith.mulf %249, %250 : vector<8x64xf32>
    %252 = arith.addf %246, %251 : vector<8x64xf32>
    %c0_66 = arith.constant 0 : index
    %c0_67 = arith.constant 0 : index
    %253 = vector.load %arg5[%c0_66, %c0_67] : memref<256x64xf32, #tpu.memory_space<vmem>>, vector<8x64xf32>
    tpu.vector_store %arg5[%c0_66, %c0_67], %244 {strides = array<i32>} : memref<256x64xf32, #tpu.memory_space<vmem>>, vector<8x64xf32>,
    %c128_68 = arith.constant 128 : index
    %c0_69 = arith.constant 0 : index
    %254 = vector.load %arg5[%c128_68, %c0_69] : memref<256x64xf32, #tpu.memory_space<vmem>>, vector<8x64xf32>
    tpu.vector_store %arg5[%c128_68, %c0_69], %252 {strides = array<i32>} : memref<256x64xf32, #tpu.memory_space<vmem>>, vector<8x64xf32>,
    %c8_70 = arith.constant 8 : index
    %c0_71 = arith.constant 0 : index
    %255 = vector.load %arg4[%c8_70, %c0_71] : memref<256x64xf32, #tpu.memory_space<vmem>>, vector<8x64xf32>
    %256 = arith.mulf %255, %244 : vector<8x64xf32>
    %257 = vector.extract_strided_slice %101 {offsets = [0, 1], sizes = [8, 1], strides = [1, 1]} : vector<8x32xf32> to vector<8x1xf32>
    %258 = vector.extract_strided_slice %234 {offsets = [1, 0], sizes = [1, 64], strides = [1, 1]} : vector<32x64xf32> to vector<1x64xf32>
    %259 = vector.broadcast %257 : vector<8x1xf32> to vector<8x64xf32>
    %260 = vector.broadcast %258 : vector<1x64xf32> to vector<8x64xf32>
    %261 = arith.mulf %259, %260 : vector<8x64xf32>
    %262 = arith.addf %256, %261 : vector<8x64xf32>
    %c136_72 = arith.constant 136 : index
    %c0_73 = arith.constant 0 : index
    %263 = vector.load %arg4[%c136_72, %c0_73] : memref<256x64xf32, #tpu.memory_space<vmem>>, vector<8x64xf32>
    %264 = arith.mulf %263, %252 : vector<8x64xf32>
    %265 = vector.extract_strided_slice %101 {offsets = [0, 17], sizes = [8, 1], strides = [1, 1]} : vector<8x32xf32> to vector<8x1xf32>
    %266 = vector.extract_strided_slice %234 {offsets = [17, 0], sizes = [1, 64], strides = [1, 1]} : vector<32x64xf32> to vector<1x64xf32>
    %267 = vector.broadcast %265 : vector<8x1xf32> to vector<8x64xf32>
    %268 = vector.broadcast %266 : vector<1x64xf32> to vector<8x64xf32>
    %269 = arith.mulf %267, %268 : vector<8x64xf32>
    %270 = arith.addf %264, %269 : vector<8x64xf32>
    %c8_74 = arith.constant 8 : index
    %c0_75 = arith.constant 0 : index
    %271 = vector.load %arg5[%c8_74, %c0_75] : memref<256x64xf32, #tpu.memory_space<vmem>>, vector<8x64xf32>
    tpu.vector_store %arg5[%c8_74, %c0_75], %262 {strides = array<i32>} : memref<256x64xf32, #tpu.memory_space<vmem>>, vector<8x64xf32>,
    %c136_76 = arith.constant 136 : index
    %c0_77 = arith.constant 0 : index
    %272 = vector.load %arg5[%c136_76, %c0_77] : memref<256x64xf32, #tpu.memory_space<vmem>>, vector<8x64xf32>
    tpu.vector_store %arg5[%c136_76, %c0_77], %270 {strides = array<i32>} : memref<256x64xf32, #tpu.memory_space<vmem>>, vector<8x64xf32>,
    %c16_78 = arith.constant 16 : index
    %c0_79 = arith.constant 0 : index
    %273 = vector.load %arg4[%c16_78, %c0_79] : memref<256x64xf32, #tpu.memory_space<vmem>>, vector<8x64xf32>
    %274 = arith.mulf %273, %262 : vector<8x64xf32>
    %275 = vector.extract_strided_slice %101 {offsets = [0, 2], sizes = [8, 1], strides = [1, 1]} : vector<8x32xf32> to vector<8x1xf32>
    %276 = vector.extract_strided_slice %234 {offsets = [2, 0], sizes = [1, 64], strides = [1, 1]} : vector<32x64xf32> to vector<1x64xf32>
    %277 = vector.broadcast %275 : vector<8x1xf32> to vector<8x64xf32>
    %278 = vector.broadcast %276 : vector<1x64xf32> to vector<8x64xf32>
    %279 = arith.mulf %277, %278 : vector<8x64xf32>
    %280 = arith.addf %274, %279 : vector<8x64xf32>
    %c144_80 = arith.constant 144 : index
    %c0_81 = arith.constant 0 : index
    %281 = vector.load %arg4[%c144_80, %c0_81] : memref<256x64xf32, #tpu.memory_space<vmem>>, vector<8x64xf32>
    %282 = arith.mulf %281, %270 : vector<8x64xf32>
    %283 = vector.extract_strided_slice %101 {offsets = [0, 18], sizes = [8, 1], strides = [1, 1]} : vector<8x32xf32> to vector<8x1xf32>
    %284 = vector.extract_strided_slice %234 {offsets = [18, 0], sizes = [1, 64], strides = [1, 1]} : vector<32x64xf32> to vector<1x64xf32>
    %285 = vector.broadcast %283 : vector<8x1xf32> to vector<8x64xf32>
    %286 = vector.broadcast %284 : vector<1x64xf32> to vector<8x64xf32>
    %287 = arith.mulf %285, %286 : vector<8x64xf32>
    %288 = arith.addf %282, %287 : vector<8x64xf32>
    %c16_82 = arith.constant 16 : index
    %c0_83 = arith.constant 0 : index
    %289 = vector.load %arg5[%c16_82, %c0_83] : memref<256x64xf32, #tpu.memory_space<vmem>>, vector<8x64xf32>
    tpu.vector_store %arg5[%c16_82, %c0_83], %280 {strides = array<i32>} : memref<256x64xf32, #tpu.memory_space<vmem>>, vector<8x64xf32>,
    %c144_84 = arith.constant 144 : index
    %c0_85 = arith.constant 0 : index
    %290 = vector.load %arg5[%c144_84, %c0_85] : memref<256x64xf32, #tpu.memory_space<vmem>>, vector<8x64xf32>
    tpu.vector_store %arg5[%c144_84, %c0_85], %288 {strides = array<i32>} : memref<256x64xf32, #tpu.memory_space<vmem>>, vector<8x64xf32>,
    %c24_86 = arith.constant 24 : index
    %c0_87 = arith.constant 0 : index
    %291 = vector.load %arg4[%c24_86, %c0_87] : memref<256x64xf32, #tpu.memory_space<vmem>>, vector<8x64xf32>
    %292 = arith.mulf %291, %280 : vector<8x64xf32>
    %293 = vector.extract_strided_slice %101 {offsets = [0, 3], sizes = [8, 1], strides = [1, 1]} : vector<8x32xf32> to vector<8x1xf32>
    %294 = vector.extract_strided_slice %234 {offsets = [3, 0], sizes = [1, 64], strides = [1, 1]} : vector<32x64xf32> to vector<1x64xf32>
    %295 = vector.broadcast %293 : vector<8x1xf32> to vector<8x64xf32>
    %296 = vector.broadcast %294 : vector<1x64xf32> to vector<8x64xf32>
    %297 = arith.mulf %295, %296 : vector<8x64xf32>
    %298 = arith.addf %292, %297 : vector<8x64xf32>
    %c152_88 = arith.constant 152 : index
    %c0_89 = arith.constant 0 : index
    %299 = vector.load %arg4[%c152_88, %c0_89] : memref<256x64xf32, #tpu.memory_space<vmem>>, vector<8x64xf32>
    %300 = arith.mulf %299, %288 : vector<8x64xf32>
    %301 = vector.extract_strided_slice %101 {offsets = [0, 19], sizes = [8, 1], strides = [1, 1]} : vector<8x32xf32> to vector<8x1xf32>
    %302 = vector.extract_strided_slice %234 {offsets = [19, 0], sizes = [1, 64], strides = [1, 1]} : vector<32x64xf32> to vector<1x64xf32>
    %303 = vector.broadcast %301 : vector<8x1xf32> to vector<8x64xf32>
    %304 = vector.broadcast %302 : vector<1x64xf32> to vector<8x64xf32>
    %305 = arith.mulf %303, %304 : vector<8x64xf32>
    %306 = arith.addf %300, %305 : vector<8x64xf32>
    %c24_90 = arith.constant 24 : index
    %c0_91 = arith.constant 0 : index
    %307 = vector.load %arg5[%c24_90, %c0_91] : memref<256x64xf32, #tpu.memory_space<vmem>>, vector<8x64xf32>
    tpu.vector_store %arg5[%c24_90, %c0_91], %298 {strides = array<i32>} : memref<256x64xf32, #tpu.memory_space<vmem>>, vector<8x64xf32>,
    %c152_92 = arith.constant 152 : index
    %c0_93 = arith.constant 0 : index
    %308 = vector.load %arg5[%c152_92, %c0_93] : memref<256x64xf32, #tpu.memory_space<vmem>>, vector<8x64xf32>
    tpu.vector_store %arg5[%c152_92, %c0_93], %306 {strides = array<i32>} : memref<256x64xf32, #tpu.memory_space<vmem>>, vector<8x64xf32>,
    %c32_94 = arith.constant 32 : index
    %c0_95 = arith.constant 0 : index
    %309 = vector.load %arg4[%c32_94, %c0_95] : memref<256x64xf32, #tpu.memory_space<vmem>>, vector<8x64xf32>
    %310 = arith.mulf %309, %298 : vector<8x64xf32>
    %311 = vector.extract_strided_slice %101 {offsets = [0, 4], sizes = [8, 1], strides = [1, 1]} : vector<8x32xf32> to vector<8x1xf32>
    %312 = vector.extract_strided_slice %234 {offsets = [4, 0], sizes = [1, 64], strides = [1, 1]} : vector<32x64xf32> to vector<1x64xf32>
    %313 = vector.broadcast %311 : vector<8x1xf32> to vector<8x64xf32>
    %314 = vector.broadcast %312 : vector<1x64xf32> to vector<8x64xf32>
    %315 = arith.mulf %313, %314 : vector<8x64xf32>
    %316 = arith.addf %310, %315 : vector<8x64xf32>
    %c160_96 = arith.constant 160 : index
    %c0_97 = arith.constant 0 : index
    %317 = vector.load %arg4[%c160_96, %c0_97] : memref<256x64xf32, #tpu.memory_space<vmem>>, vector<8x64xf32>
    %318 = arith.mulf %317, %306 : vector<8x64xf32>
    %319 = vector.extract_strided_slice %101 {offsets = [0, 20], sizes = [8, 1], strides = [1, 1]} : vector<8x32xf32> to vector<8x1xf32>
    %320 = vector.extract_strided_slice %234 {offsets = [20, 0], sizes = [1, 64], strides = [1, 1]} : vector<32x64xf32> to vector<1x64xf32>
    %321 = vector.broadcast %319 : vector<8x1xf32> to vector<8x64xf32>
    %322 = vector.broadcast %320 : vector<1x64xf32> to vector<8x64xf32>
    %323 = arith.mulf %321, %322 : vector<8x64xf32>
    %324 = arith.addf %318, %323 : vector<8x64xf32>
    %c32_98 = arith.constant 32 : index
    %c0_99 = arith.constant 0 : index
    %325 = vector.load %arg5[%c32_98, %c0_99] : memref<256x64xf32, #tpu.memory_space<vmem>>, vector<8x64xf32>
    tpu.vector_store %arg5[%c32_98, %c0_99], %316 {strides = array<i32>} : memref<256x64xf32, #tpu.memory_space<vmem>>, vector<8x64xf32>,
    %c160_100 = arith.constant 160 : index
    %c0_101 = arith.constant 0 : index
    %326 = vector.load %arg5[%c160_100, %c0_101] : memref<256x64xf32, #tpu.memory_space<vmem>>, vector<8x64xf32>
    tpu.vector_store %arg5[%c160_100, %c0_101], %324 {strides = array<i32>} : memref<256x64xf32, #tpu.memory_space<vmem>>, vector<8x64xf32>,
    %c40_102 = arith.constant 40 : index
    %c0_103 = arith.constant 0 : index
    %327 = vector.load %arg4[%c40_102, %c0_103] : memref<256x64xf32, #tpu.memory_space<vmem>>, vector<8x64xf32>
    %328 = arith.mulf %327, %316 : vector<8x64xf32>
    %329 = vector.extract_strided_slice %101 {offsets = [0, 5], sizes = [8, 1], strides = [1, 1]} : vector<8x32xf32> to vector<8x1xf32>
    %330 = vector.extract_strided_slice %234 {offsets = [5, 0], sizes = [1, 64], strides = [1, 1]} : vector<32x64xf32> to vector<1x64xf32>
    %331 = vector.broadcast %329 : vector<8x1xf32> to vector<8x64xf32>
    %332 = vector.broadcast %330 : vector<1x64xf32> to vector<8x64xf32>
    %333 = arith.mulf %331, %332 : vector<8x64xf32>
    %334 = arith.addf %328, %333 : vector<8x64xf32>
    %c168_104 = arith.constant 168 : index
    %c0_105 = arith.constant 0 : index
    %335 = vector.load %arg4[%c168_104, %c0_105] : memref<256x64xf32, #tpu.memory_space<vmem>>, vector<8x64xf32>
    %336 = arith.mulf %335, %324 : vector<8x64xf32>
    %337 = vector.extract_strided_slice %101 {offsets = [0, 21], sizes = [8, 1], strides = [1, 1]} : vector<8x32xf32> to vector<8x1xf32>
    %338 = vector.extract_strided_slice %234 {offsets = [21, 0], sizes = [1, 64], strides = [1, 1]} : vector<32x64xf32> to vector<1x64xf32>
    %339 = vector.broadcast %337 : vector<8x1xf32> to vector<8x64xf32>
    %340 = vector.broadcast %338 : vector<1x64xf32> to vector<8x64xf32>
    %341 = arith.mulf %339, %340 : vector<8x64xf32>
    %342 = arith.addf %336, %341 : vector<8x64xf32>
    %c40_106 = arith.constant 40 : index
    %c0_107 = arith.constant 0 : index
    %343 = vector.load %arg5[%c40_106, %c0_107] : memref<256x64xf32, #tpu.memory_space<vmem>>, vector<8x64xf32>
    tpu.vector_store %arg5[%c40_106, %c0_107], %334 {strides = array<i32>} : memref<256x64xf32, #tpu.memory_space<vmem>>, vector<8x64xf32>,
    %c168_108 = arith.constant 168 : index
    %c0_109 = arith.constant 0 : index
    %344 = vector.load %arg5[%c168_108, %c0_109] : memref<256x64xf32, #tpu.memory_space<vmem>>, vector<8x64xf32>
    tpu.vector_store %arg5[%c168_108, %c0_109], %342 {strides = array<i32>} : memref<256x64xf32, #tpu.memory_space<vmem>>, vector<8x64xf32>,
    %c48_110 = arith.constant 48 : index
    %c0_111 = arith.constant 0 : index
    %345 = vector.load %arg4[%c48_110, %c0_111] : memref<256x64xf32, #tpu.memory_space<vmem>>, vector<8x64xf32>
    %346 = arith.mulf %345, %334 : vector<8x64xf32>
    %347 = vector.extract_strided_slice %101 {offsets = [0, 6], sizes = [8, 1], strides = [1, 1]} : vector<8x32xf32> to vector<8x1xf32>
    %348 = vector.extract_strided_slice %234 {offsets = [6, 0], sizes = [1, 64], strides = [1, 1]} : vector<32x64xf32> to vector<1x64xf32>
    %349 = vector.broadcast %347 : vector<8x1xf32> to vector<8x64xf32>
    %350 = vector.broadcast %348 : vector<1x64xf32> to vector<8x64xf32>
    %351 = arith.mulf %349, %350 : vector<8x64xf32>
    %352 = arith.addf %346, %351 : vector<8x64xf32>
    %c176_112 = arith.constant 176 : index
    %c0_113 = arith.constant 0 : index
    %353 = vector.load %arg4[%c176_112, %c0_113] : memref<256x64xf32, #tpu.memory_space<vmem>>, vector<8x64xf32>
    %354 = arith.mulf %353, %342 : vector<8x64xf32>
    %355 = vector.extract_strided_slice %101 {offsets = [0, 22], sizes = [8, 1], strides = [1, 1]} : vector<8x32xf32> to vector<8x1xf32>
    %356 = vector.extract_strided_slice %234 {offsets = [22, 0], sizes = [1, 64], strides = [1, 1]} : vector<32x64xf32> to vector<1x64xf32>
    %357 = vector.broadcast %355 : vector<8x1xf32> to vector<8x64xf32>
    %358 = vector.broadcast %356 : vector<1x64xf32> to vector<8x64xf32>
    %359 = arith.mulf %357, %358 : vector<8x64xf32>
    %360 = arith.addf %354, %359 : vector<8x64xf32>
    %c48_114 = arith.constant 48 : index
    %c0_115 = arith.constant 0 : index
    %361 = vector.load %arg5[%c48_114, %c0_115] : memref<256x64xf32, #tpu.memory_space<vmem>>, vector<8x64xf32>
    tpu.vector_store %arg5[%c48_114, %c0_115], %352 {strides = array<i32>} : memref<256x64xf32, #tpu.memory_space<vmem>>, vector<8x64xf32>,
    %c176_116 = arith.constant 176 : index
    %c0_117 = arith.constant 0 : index
    %362 = vector.load %arg5[%c176_116, %c0_117] : memref<256x64xf32, #tpu.memory_space<vmem>>, vector<8x64xf32>
    tpu.vector_store %arg5[%c176_116, %c0_117], %360 {strides = array<i32>} : memref<256x64xf32, #tpu.memory_space<vmem>>, vector<8x64xf32>,
    %c56_118 = arith.constant 56 : index
    %c0_119 = arith.constant 0 : index
    %363 = vector.load %arg4[%c56_118, %c0_119] : memref<256x64xf32, #tpu.memory_space<vmem>>, vector<8x64xf32>
    %364 = arith.mulf %363, %352 : vector<8x64xf32>
    %365 = vector.extract_strided_slice %101 {offsets = [0, 7], sizes = [8, 1], strides = [1, 1]} : vector<8x32xf32> to vector<8x1xf32>
    %366 = vector.extract_strided_slice %234 {offsets = [7, 0], sizes = [1, 64], strides = [1, 1]} : vector<32x64xf32> to vector<1x64xf32>
    %367 = vector.broadcast %365 : vector<8x1xf32> to vector<8x64xf32>
    %368 = vector.broadcast %366 : vector<1x64xf32> to vector<8x64xf32>
    %369 = arith.mulf %367, %368 : vector<8x64xf32>
    %370 = arith.addf %364, %369 : vector<8x64xf32>
    %c184_120 = arith.constant 184 : index
    %c0_121 = arith.constant 0 : index
    %371 = vector.load %arg4[%c184_120, %c0_121] : memref<256x64xf32, #tpu.memory_space<vmem>>, vector<8x64xf32>
    %372 = arith.mulf %371, %360 : vector<8x64xf32>
    %373 = vector.extract_strided_slice %101 {offsets = [0, 23], sizes = [8, 1], strides = [1, 1]} : vector<8x32xf32> to vector<8x1xf32>
    %374 = vector.extract_strided_slice %234 {offsets = [23, 0], sizes = [1, 64], strides = [1, 1]} : vector<32x64xf32> to vector<1x64xf32>
    %375 = vector.broadcast %373 : vector<8x1xf32> to vector<8x64xf32>
    %376 = vector.broadcast %374 : vector<1x64xf32> to vector<8x64xf32>
    %377 = arith.mulf %375, %376 : vector<8x64xf32>
    %378 = arith.addf %372, %377 : vector<8x64xf32>
    %c56_122 = arith.constant 56 : index
    %c0_123 = arith.constant 0 : index
    %379 = vector.load %arg5[%c56_122, %c0_123] : memref<256x64xf32, #tpu.memory_space<vmem>>, vector<8x64xf32>
    tpu.vector_store %arg5[%c56_122, %c0_123], %370 {strides = array<i32>} : memref<256x64xf32, #tpu.memory_space<vmem>>, vector<8x64xf32>,
    %c184_124 = arith.constant 184 : index
    %c0_125 = arith.constant 0 : index
    %380 = vector.load %arg5[%c184_124, %c0_125] : memref<256x64xf32, #tpu.memory_space<vmem>>, vector<8x64xf32>
    tpu.vector_store %arg5[%c184_124, %c0_125], %378 {strides = array<i32>} : memref<256x64xf32, #tpu.memory_space<vmem>>, vector<8x64xf32>,
    %c64_126 = arith.constant 64 : index
    %c0_127 = arith.constant 0 : index
    %381 = vector.load %arg4[%c64_126, %c0_127] : memref<256x64xf32, #tpu.memory_space<vmem>>, vector<8x64xf32>
    %382 = arith.mulf %381, %370 : vector<8x64xf32>
    %383 = vector.extract_strided_slice %101 {offsets = [0, 8], sizes = [8, 1], strides = [1, 1]} : vector<8x32xf32> to vector<8x1xf32>
    %384 = vector.extract_strided_slice %234 {offsets = [8, 0], sizes = [1, 64], strides = [1, 1]} : vector<32x64xf32> to vector<1x64xf32>
    %385 = vector.broadcast %383 : vector<8x1xf32> to vector<8x64xf32>
    %386 = vector.broadcast %384 : vector<1x64xf32> to vector<8x64xf32>
    %387 = arith.mulf %385, %386 : vector<8x64xf32>
    %388 = arith.addf %382, %387 : vector<8x64xf32>
    %c192_128 = arith.constant 192 : index
    %c0_129 = arith.constant 0 : index
    %389 = vector.load %arg4[%c192_128, %c0_129] : memref<256x64xf32, #tpu.memory_space<vmem>>, vector<8x64xf32>
    %390 = arith.mulf %389, %378 : vector<8x64xf32>
    %391 = vector.extract_strided_slice %101 {offsets = [0, 24], sizes = [8, 1], strides = [1, 1]} : vector<8x32xf32> to vector<8x1xf32>
    %392 = vector.extract_strided_slice %234 {offsets = [24, 0], sizes = [1, 64], strides = [1, 1]} : vector<32x64xf32> to vector<1x64xf32>
    %393 = vector.broadcast %391 : vector<8x1xf32> to vector<8x64xf32>
    %394 = vector.broadcast %392 : vector<1x64xf32> to vector<8x64xf32>
    %395 = arith.mulf %393, %394 : vector<8x64xf32>
    %396 = arith.addf %390, %395 : vector<8x64xf32>
    %c64_130 = arith.constant 64 : index
    %c0_131 = arith.constant 0 : index
    %397 = vector.load %arg5[%c64_130, %c0_131] : memref<256x64xf32, #tpu.memory_space<vmem>>, vector<8x64xf32>
    tpu.vector_store %arg5[%c64_130, %c0_131], %388 {strides = array<i32>} : memref<256x64xf32, #tpu.memory_space<vmem>>, vector<8x64xf32>,
    %c192_132 = arith.constant 192 : index
    %c0_133 = arith.constant 0 : index
    %398 = vector.load %arg5[%c192_132, %c0_133] : memref<256x64xf32, #tpu.memory_space<vmem>>, vector<8x64xf32>
    tpu.vector_store %arg5[%c192_132, %c0_133], %396 {strides = array<i32>} : memref<256x64xf32, #tpu.memory_space<vmem>>, vector<8x64xf32>,
    %c72_134 = arith.constant 72 : index
    %c0_135 = arith.constant 0 : index
    %399 = vector.load %arg4[%c72_134, %c0_135] : memref<256x64xf32, #tpu.memory_space<vmem>>, vector<8x64xf32>
    %400 = arith.mulf %399, %388 : vector<8x64xf32>
    %401 = vector.extract_strided_slice %101 {offsets = [0, 9], sizes = [8, 1], strides = [1, 1]} : vector<8x32xf32> to vector<8x1xf32>
    %402 = vector.extract_strided_slice %234 {offsets = [9, 0], sizes = [1, 64], strides = [1, 1]} : vector<32x64xf32> to vector<1x64xf32>
    %403 = vector.broadcast %401 : vector<8x1xf32> to vector<8x64xf32>
    %404 = vector.broadcast %402 : vector<1x64xf32> to vector<8x64xf32>
    %405 = arith.mulf %403, %404 : vector<8x64xf32>
    %406 = arith.addf %400, %405 : vector<8x64xf32>
    %c200_136 = arith.constant 200 : index
    %c0_137 = arith.constant 0 : index
    %407 = vector.load %arg4[%c200_136, %c0_137] : memref<256x64xf32, #tpu.memory_space<vmem>>, vector<8x64xf32>
    %408 = arith.mulf %407, %396 : vector<8x64xf32>
    %409 = vector.extract_strided_slice %101 {offsets = [0, 25], sizes = [8, 1], strides = [1, 1]} : vector<8x32xf32> to vector<8x1xf32>
    %410 = vector.extract_strided_slice %234 {offsets = [25, 0], sizes = [1, 64], strides = [1, 1]} : vector<32x64xf32> to vector<1x64xf32>
    %411 = vector.broadcast %409 : vector<8x1xf32> to vector<8x64xf32>
    %412 = vector.broadcast %410 : vector<1x64xf32> to vector<8x64xf32>
    %413 = arith.mulf %411, %412 : vector<8x64xf32>
    %414 = arith.addf %408, %413 : vector<8x64xf32>
    %c72_138 = arith.constant 72 : index
    %c0_139 = arith.constant 0 : index
    %415 = vector.load %arg5[%c72_138, %c0_139] : memref<256x64xf32, #tpu.memory_space<vmem>>, vector<8x64xf32>
    tpu.vector_store %arg5[%c72_138, %c0_139], %406 {strides = array<i32>} : memref<256x64xf32, #tpu.memory_space<vmem>>, vector<8x64xf32>,
    %c200_140 = arith.constant 200 : index
    %c0_141 = arith.constant 0 : index
    %416 = vector.load %arg5[%c200_140, %c0_141] : memref<256x64xf32, #tpu.memory_space<vmem>>, vector<8x64xf32>
    tpu.vector_store %arg5[%c200_140, %c0_141], %414 {strides = array<i32>} : memref<256x64xf32, #tpu.memory_space<vmem>>, vector<8x64xf32>,
    %c80_142 = arith.constant 80 : index
    %c0_143 = arith.constant 0 : index
    %417 = vector.load %arg4[%c80_142, %c0_143] : memref<256x64xf32, #tpu.memory_space<vmem>>, vector<8x64xf32>
    %418 = arith.mulf %417, %406 : vector<8x64xf32>
    %419 = vector.extract_strided_slice %101 {offsets = [0, 10], sizes = [8, 1], strides = [1, 1]} : vector<8x32xf32> to vector<8x1xf32>
    %420 = vector.extract_strided_slice %234 {offsets = [10, 0], sizes = [1, 64], strides = [1, 1]} : vector<32x64xf32> to vector<1x64xf32>
    %421 = vector.broadcast %419 : vector<8x1xf32> to vector<8x64xf32>
    %422 = vector.broadcast %420 : vector<1x64xf32> to vector<8x64xf32>
    %423 = arith.mulf %421, %422 : vector<8x64xf32>
    %424 = arith.addf %418, %423 : vector<8x64xf32>
    %c208_144 = arith.constant 208 : index
    %c0_145 = arith.constant 0 : index
    %425 = vector.load %arg4[%c208_144, %c0_145] : memref<256x64xf32, #tpu.memory_space<vmem>>, vector<8x64xf32>
    %426 = arith.mulf %425, %414 : vector<8x64xf32>
    %427 = vector.extract_strided_slice %101 {offsets = [0, 26], sizes = [8, 1], strides = [1, 1]} : vector<8x32xf32> to vector<8x1xf32>
    %428 = vector.extract_strided_slice %234 {offsets = [26, 0], sizes = [1, 64], strides = [1, 1]} : vector<32x64xf32> to vector<1x64xf32>
    %429 = vector.broadcast %427 : vector<8x1xf32> to vector<8x64xf32>
    %430 = vector.broadcast %428 : vector<1x64xf32> to vector<8x64xf32>
    %431 = arith.mulf %429, %430 : vector<8x64xf32>
    %432 = arith.addf %426, %431 : vector<8x64xf32>
    %c80_146 = arith.constant 80 : index
    %c0_147 = arith.constant 0 : index
    %433 = vector.load %arg5[%c80_146, %c0_147] : memref<256x64xf32, #tpu.memory_space<vmem>>, vector<8x64xf32>
    tpu.vector_store %arg5[%c80_146, %c0_147], %424 {strides = array<i32>} : memref<256x64xf32, #tpu.memory_space<vmem>>, vector<8x64xf32>,
    %c208_148 = arith.constant 208 : index
    %c0_149 = arith.constant 0 : index
    %434 = vector.load %arg5[%c208_148, %c0_149] : memref<256x64xf32, #tpu.memory_space<vmem>>, vector<8x64xf32>
    tpu.vector_store %arg5[%c208_148, %c0_149], %432 {strides = array<i32>} : memref<256x64xf32, #tpu.memory_space<vmem>>, vector<8x64xf32>,
    %c88_150 = arith.constant 88 : index
    %c0_151 = arith.constant 0 : index
    %435 = vector.load %arg4[%c88_150, %c0_151] : memref<256x64xf32, #tpu.memory_space<vmem>>, vector<8x64xf32>
    %436 = arith.mulf %435, %424 : vector<8x64xf32>
    %437 = vector.extract_strided_slice %101 {offsets = [0, 11], sizes = [8, 1], strides = [1, 1]} : vector<8x32xf32> to vector<8x1xf32>
    %438 = vector.extract_strided_slice %234 {offsets = [11, 0], sizes = [1, 64], strides = [1, 1]} : vector<32x64xf32> to vector<1x64xf32>
    %439 = vector.broadcast %437 : vector<8x1xf32> to vector<8x64xf32>
    %440 = vector.broadcast %438 : vector<1x64xf32> to vector<8x64xf32>
    %441 = arith.mulf %439, %440 : vector<8x64xf32>
    %442 = arith.addf %436, %441 : vector<8x64xf32>
    %c216_152 = arith.constant 216 : index
    %c0_153 = arith.constant 0 : index
    %443 = vector.load %arg4[%c216_152, %c0_153] : memref<256x64xf32, #tpu.memory_space<vmem>>, vector<8x64xf32>
    %444 = arith.mulf %443, %432 : vector<8x64xf32>
    %445 = vector.extract_strided_slice %101 {offsets = [0, 27], sizes = [8, 1], strides = [1, 1]} : vector<8x32xf32> to vector<8x1xf32>
    %446 = vector.extract_strided_slice %234 {offsets = [27, 0], sizes = [1, 64], strides = [1, 1]} : vector<32x64xf32> to vector<1x64xf32>
    %447 = vector.broadcast %445 : vector<8x1xf32> to vector<8x64xf32>
    %448 = vector.broadcast %446 : vector<1x64xf32> to vector<8x64xf32>
    %449 = arith.mulf %447, %448 : vector<8x64xf32>
    %450 = arith.addf %444, %449 : vector<8x64xf32>
    %c88_154 = arith.constant 88 : index
    %c0_155 = arith.constant 0 : index
    %451 = vector.load %arg5[%c88_154, %c0_155] : memref<256x64xf32, #tpu.memory_space<vmem>>, vector<8x64xf32>
    tpu.vector_store %arg5[%c88_154, %c0_155], %442 {strides = array<i32>} : memref<256x64xf32, #tpu.memory_space<vmem>>, vector<8x64xf32>,
    %c216_156 = arith.constant 216 : index
    %c0_157 = arith.constant 0 : index
    %452 = vector.load %arg5[%c216_156, %c0_157] : memref<256x64xf32, #tpu.memory_space<vmem>>, vector<8x64xf32>
    tpu.vector_store %arg5[%c216_156, %c0_157], %450 {strides = array<i32>} : memref<256x64xf32, #tpu.memory_space<vmem>>, vector<8x64xf32>,
    %c96_158 = arith.constant 96 : index
    %c0_159 = arith.constant 0 : index
    %453 = vector.load %arg4[%c96_158, %c0_159] : memref<256x64xf32, #tpu.memory_space<vmem>>, vector<8x64xf32>
    %454 = arith.mulf %453, %442 : vector<8x64xf32>
    %455 = vector.extract_strided_slice %101 {offsets = [0, 12], sizes = [8, 1], strides = [1, 1]} : vector<8x32xf32> to vector<8x1xf32>
    %456 = vector.extract_strided_slice %234 {offsets = [12, 0], sizes = [1, 64], strides = [1, 1]} : vector<32x64xf32> to vector<1x64xf32>
    %457 = vector.broadcast %455 : vector<8x1xf32> to vector<8x64xf32>
    %458 = vector.broadcast %456 : vector<1x64xf32> to vector<8x64xf32>
    %459 = arith.mulf %457, %458 : vector<8x64xf32>
    %460 = arith.addf %454, %459 : vector<8x64xf32>
    %c224_160 = arith.constant 224 : index
    %c0_161 = arith.constant 0 : index
    %461 = vector.load %arg4[%c224_160, %c0_161] : memref<256x64xf32, #tpu.memory_space<vmem>>, vector<8x64xf32>
    %462 = arith.mulf %461, %450 : vector<8x64xf32>
    %463 = vector.extract_strided_slice %101 {offsets = [0, 28], sizes = [8, 1], strides = [1, 1]} : vector<8x32xf32> to vector<8x1xf32>
    %464 = vector.extract_strided_slice %234 {offsets = [28, 0], sizes = [1, 64], strides = [1, 1]} : vector<32x64xf32> to vector<1x64xf32>
    %465 = vector.broadcast %463 : vector<8x1xf32> to vector<8x64xf32>
    %466 = vector.broadcast %464 : vector<1x64xf32> to vector<8x64xf32>
    %467 = arith.mulf %465, %466 : vector<8x64xf32>
    %468 = arith.addf %462, %467 : vector<8x64xf32>
    %c96_162 = arith.constant 96 : index
    %c0_163 = arith.constant 0 : index
    %469 = vector.load %arg5[%c96_162, %c0_163] : memref<256x64xf32, #tpu.memory_space<vmem>>, vector<8x64xf32>
    tpu.vector_store %arg5[%c96_162, %c0_163], %460 {strides = array<i32>} : memref<256x64xf32, #tpu.memory_space<vmem>>, vector<8x64xf32>,
    %c224_164 = arith.constant 224 : index
    %c0_165 = arith.constant 0 : index
    %470 = vector.load %arg5[%c224_164, %c0_165] : memref<256x64xf32, #tpu.memory_space<vmem>>, vector<8x64xf32>
    tpu.vector_store %arg5[%c224_164, %c0_165], %468 {strides = array<i32>} : memref<256x64xf32, #tpu.memory_space<vmem>>, vector<8x64xf32>,
    %c104_166 = arith.constant 104 : index
    %c0_167 = arith.constant 0 : index
    %471 = vector.load %arg4[%c104_166, %c0_167] : memref<256x64xf32, #tpu.memory_space<vmem>>, vector<8x64xf32>
    %472 = arith.mulf %471, %460 : vector<8x64xf32>
    %473 = vector.extract_strided_slice %101 {offsets = [0, 13], sizes = [8, 1], strides = [1, 1]} : vector<8x32xf32> to vector<8x1xf32>
    %474 = vector.extract_strided_slice %234 {offsets = [13, 0], sizes = [1, 64], strides = [1, 1]} : vector<32x64xf32> to vector<1x64xf32>
    %475 = vector.broadcast %473 : vector<8x1xf32> to vector<8x64xf32>
    %476 = vector.broadcast %474 : vector<1x64xf32> to vector<8x64xf32>
    %477 = arith.mulf %475, %476 : vector<8x64xf32>
    %478 = arith.addf %472, %477 : vector<8x64xf32>
    %c232_168 = arith.constant 232 : index
    %c0_169 = arith.constant 0 : index
    %479 = vector.load %arg4[%c232_168, %c0_169] : memref<256x64xf32, #tpu.memory_space<vmem>>, vector<8x64xf32>
    %480 = arith.mulf %479, %468 : vector<8x64xf32>
    %481 = vector.extract_strided_slice %101 {offsets = [0, 29], sizes = [8, 1], strides = [1, 1]} : vector<8x32xf32> to vector<8x1xf32>
    %482 = vector.extract_strided_slice %234 {offsets = [29, 0], sizes = [1, 64], strides = [1, 1]} : vector<32x64xf32> to vector<1x64xf32>
    %483 = vector.broadcast %481 : vector<8x1xf32> to vector<8x64xf32>
    %484 = vector.broadcast %482 : vector<1x64xf32> to vector<8x64xf32>
    %485 = arith.mulf %483, %484 : vector<8x64xf32>
    %486 = arith.addf %480, %485 : vector<8x64xf32>
    %c104_170 = arith.constant 104 : index
    %c0_171 = arith.constant 0 : index
    %487 = vector.load %arg5[%c104_170, %c0_171] : memref<256x64xf32, #tpu.memory_space<vmem>>, vector<8x64xf32>
    tpu.vector_store %arg5[%c104_170, %c0_171], %478 {strides = array<i32>} : memref<256x64xf32, #tpu.memory_space<vmem>>, vector<8x64xf32>,
    %c232_172 = arith.constant 232 : index
    %c0_173 = arith.constant 0 : index
    %488 = vector.load %arg5[%c232_172, %c0_173] : memref<256x64xf32, #tpu.memory_space<vmem>>, vector<8x64xf32>
    tpu.vector_store %arg5[%c232_172, %c0_173], %486 {strides = array<i32>} : memref<256x64xf32, #tpu.memory_space<vmem>>, vector<8x64xf32>,
    %c112_174 = arith.constant 112 : index
    %c0_175 = arith.constant 0 : index
    %489 = vector.load %arg4[%c112_174, %c0_175] : memref<256x64xf32, #tpu.memory_space<vmem>>, vector<8x64xf32>
    %490 = arith.mulf %489, %478 : vector<8x64xf32>
    %491 = vector.extract_strided_slice %101 {offsets = [0, 14], sizes = [8, 1], strides = [1, 1]} : vector<8x32xf32> to vector<8x1xf32>
    %492 = vector.extract_strided_slice %234 {offsets = [14, 0], sizes = [1, 64], strides = [1, 1]} : vector<32x64xf32> to vector<1x64xf32>
    %493 = vector.broadcast %491 : vector<8x1xf32> to vector<8x64xf32>
    %494 = vector.broadcast %492 : vector<1x64xf32> to vector<8x64xf32>
    %495 = arith.mulf %493, %494 : vector<8x64xf32>
    %496 = arith.addf %490, %495 : vector<8x64xf32>
    %c240_176 = arith.constant 240 : index
    %c0_177 = arith.constant 0 : index
    %497 = vector.load %arg4[%c240_176, %c0_177] : memref<256x64xf32, #tpu.memory_space<vmem>>, vector<8x64xf32>
    %498 = arith.mulf %497, %486 : vector<8x64xf32>
    %499 = vector.extract_strided_slice %101 {offsets = [0, 30], sizes = [8, 1], strides = [1, 1]} : vector<8x32xf32> to vector<8x1xf32>
    %500 = vector.extract_strided_slice %234 {offsets = [30, 0], sizes = [1, 64], strides = [1, 1]} : vector<32x64xf32> to vector<1x64xf32>
    %501 = vector.broadcast %499 : vector<8x1xf32> to vector<8x64xf32>
    %502 = vector.broadcast %500 : vector<1x64xf32> to vector<8x64xf32>
    %503 = arith.mulf %501, %502 : vector<8x64xf32>
    %504 = arith.addf %498, %503 : vector<8x64xf32>
    %c112_178 = arith.constant 112 : index
    %c0_179 = arith.constant 0 : index
    %505 = vector.load %arg5[%c112_178, %c0_179] : memref<256x64xf32, #tpu.memory_space<vmem>>, vector<8x64xf32>
    tpu.vector_store %arg5[%c112_178, %c0_179], %496 {strides = array<i32>} : memref<256x64xf32, #tpu.memory_space<vmem>>, vector<8x64xf32>,
    %c240_180 = arith.constant 240 : index
    %c0_181 = arith.constant 0 : index
    %506 = vector.load %arg5[%c240_180, %c0_181] : memref<256x64xf32, #tpu.memory_space<vmem>>, vector<8x64xf32>
    tpu.vector_store %arg5[%c240_180, %c0_181], %504 {strides = array<i32>} : memref<256x64xf32, #tpu.memory_space<vmem>>, vector<8x64xf32>,
    %c120_182 = arith.constant 120 : index
    %c0_183 = arith.constant 0 : index
    %507 = vector.load %arg4[%c120_182, %c0_183] : memref<256x64xf32, #tpu.memory_space<vmem>>, vector<8x64xf32>
    %508 = arith.mulf %507, %496 : vector<8x64xf32>
    %509 = vector.extract_strided_slice %101 {offsets = [0, 15], sizes = [8, 1], strides = [1, 1]} : vector<8x32xf32> to vector<8x1xf32>
    %510 = vector.extract_strided_slice %234 {offsets = [15, 0], sizes = [1, 64], strides = [1, 1]} : vector<32x64xf32> to vector<1x64xf32>
    %511 = vector.broadcast %509 : vector<8x1xf32> to vector<8x64xf32>
    %512 = vector.broadcast %510 : vector<1x64xf32> to vector<8x64xf32>
    %513 = arith.mulf %511, %512 : vector<8x64xf32>
    %514 = arith.addf %508, %513 : vector<8x64xf32>
    %c248_184 = arith.constant 248 : index
    %c0_185 = arith.constant 0 : index
    %515 = vector.load %arg4[%c248_184, %c0_185] : memref<256x64xf32, #tpu.memory_space<vmem>>, vector<8x64xf32>
    %516 = arith.mulf %515, %504 : vector<8x64xf32>
    %517 = vector.extract_strided_slice %101 {offsets = [0, 31], sizes = [8, 1], strides = [1, 1]} : vector<8x32xf32> to vector<8x1xf32>
    %518 = vector.extract_strided_slice %234 {offsets = [31, 0], sizes = [1, 64], strides = [1, 1]} : vector<32x64xf32> to vector<1x64xf32>
    %519 = vector.broadcast %517 : vector<8x1xf32> to vector<8x64xf32>
    %520 = vector.broadcast %518 : vector<1x64xf32> to vector<8x64xf32>
    %521 = arith.mulf %519, %520 : vector<8x64xf32>
    %522 = arith.addf %516, %521 : vector<8x64xf32>
    %c120_186 = arith.constant 120 : index
    %c0_187 = arith.constant 0 : index
    %523 = vector.load %arg5[%c120_186, %c0_187] : memref<256x64xf32, #tpu.memory_space<vmem>>, vector<8x64xf32>
    tpu.vector_store %arg5[%c120_186, %c0_187], %514 {strides = array<i32>} : memref<256x64xf32, #tpu.memory_space<vmem>>, vector<8x64xf32>,
    %c248_188 = arith.constant 248 : index
    %c0_189 = arith.constant 0 : index
    %524 = vector.load %arg5[%c248_188, %c0_189] : memref<256x64xf32, #tpu.memory_space<vmem>>, vector<8x64xf32>
    tpu.vector_store %arg5[%c248_188, %c0_189], %522 {strides = array<i32>} : memref<256x64xf32, #tpu.memory_space<vmem>>, vector<8x64xf32>,
    %525 = vector.extract_strided_slice %102 {offsets = [0, 0], sizes = [32, 1], strides = [1, 1]} : vector<32x8xf32> to vector<32x1xf32>
    %c0_190 = arith.constant 0 : index
    %c0_191 = arith.constant 0 : index
    %526 = tpu.strided_load %arg5[%c0_190, %c0_191] {strides = array<i32: 8, 1>} : memref<256x64xf32, #tpu.memory_space<vmem>>, vector<32x64xf32>
    %527 = vector.broadcast %525 : vector<32x1xf32> to vector<32x64xf32>
    %528 = arith.mulf %527, %526 : vector<32x64xf32>
    %529 = vector.extract_strided_slice %102 {offsets = [0, 1], sizes = [32, 1], strides = [1, 1]} : vector<32x8xf32> to vector<32x1xf32>
    %c1 = arith.constant 1 : index
    %c0_192 = arith.constant 0 : index
    %530 = tpu.strided_load %arg5[%c1, %c0_192] {strides = array<i32: 8, 1>} : memref<256x64xf32, #tpu.memory_space<vmem>>, vector<32x64xf32>
    %531 = vector.broadcast %529 : vector<32x1xf32> to vector<32x64xf32>
    %532 = arith.mulf %531, %530 : vector<32x64xf32>
    %533 = arith.addf %528, %532 : vector<32x64xf32>
    %534 = vector.extract_strided_slice %102 {offsets = [0, 2], sizes = [32, 1], strides = [1, 1]} : vector<32x8xf32> to vector<32x1xf32>
    %c2 = arith.constant 2 : index
    %c0_193 = arith.constant 0 : index
    %535 = tpu.strided_load %arg5[%c2, %c0_193] {strides = array<i32: 8, 1>} : memref<256x64xf32, #tpu.memory_space<vmem>>, vector<32x64xf32>
    %536 = vector.broadcast %534 : vector<32x1xf32> to vector<32x64xf32>
    %537 = arith.mulf %536, %535 : vector<32x64xf32>
    %538 = arith.addf %533, %537 : vector<32x64xf32>
    %539 = vector.extract_strided_slice %102 {offsets = [0, 3], sizes = [32, 1], strides = [1, 1]} : vector<32x8xf32> to vector<32x1xf32>
    %c3 = arith.constant 3 : index
    %c0_194 = arith.constant 0 : index
    %540 = tpu.strided_load %arg5[%c3, %c0_194] {strides = array<i32: 8, 1>} : memref<256x64xf32, #tpu.memory_space<vmem>>, vector<32x64xf32>
    %541 = vector.broadcast %539 : vector<32x1xf32> to vector<32x64xf32>
    %542 = arith.mulf %541, %540 : vector<32x64xf32>
    %543 = arith.addf %538, %542 : vector<32x64xf32>
    %544 = vector.extract_strided_slice %102 {offsets = [0, 4], sizes = [32, 1], strides = [1, 1]} : vector<32x8xf32> to vector<32x1xf32>
    %c4 = arith.constant 4 : index
    %c0_195 = arith.constant 0 : index
    %545 = tpu.strided_load %arg5[%c4, %c0_195] {strides = array<i32: 8, 1>} : memref<256x64xf32, #tpu.memory_space<vmem>>, vector<32x64xf32>
    %546 = vector.broadcast %544 : vector<32x1xf32> to vector<32x64xf32>
    %547 = arith.mulf %546, %545 : vector<32x64xf32>
    %548 = arith.addf %543, %547 : vector<32x64xf32>
    %549 = vector.extract_strided_slice %102 {offsets = [0, 5], sizes = [32, 1], strides = [1, 1]} : vector<32x8xf32> to vector<32x1xf32>
    %c5 = arith.constant 5 : index
    %c0_196 = arith.constant 0 : index
    %550 = tpu.strided_load %arg5[%c5, %c0_196] {strides = array<i32: 8, 1>} : memref<256x64xf32, #tpu.memory_space<vmem>>, vector<32x64xf32>
    %551 = vector.broadcast %549 : vector<32x1xf32> to vector<32x64xf32>
    %552 = arith.mulf %551, %550 : vector<32x64xf32>
    %553 = arith.addf %548, %552 : vector<32x64xf32>
    %554 = vector.extract_strided_slice %102 {offsets = [0, 6], sizes = [32, 1], strides = [1, 1]} : vector<32x8xf32> to vector<32x1xf32>
    %c6 = arith.constant 6 : index
    %c0_197 = arith.constant 0 : index
    %555 = tpu.strided_load %arg5[%c6, %c0_197] {strides = array<i32: 8, 1>} : memref<256x64xf32, #tpu.memory_space<vmem>>, vector<32x64xf32>
    %556 = vector.broadcast %554 : vector<32x1xf32> to vector<32x64xf32>
    %557 = arith.mulf %556, %555 : vector<32x64xf32>
    %558 = arith.addf %553, %557 : vector<32x64xf32>
    %559 = vector.extract_strided_slice %102 {offsets = [0, 7], sizes = [32, 1], strides = [1, 1]} : vector<32x8xf32> to vector<32x1xf32>
    %c7 = arith.constant 7 : index
    %c0_198 = arith.constant 0 : index
    %560 = tpu.strided_load %arg5[%c7, %c0_198] {strides = array<i32: 8, 1>} : memref<256x64xf32, #tpu.memory_space<vmem>>, vector<32x64xf32>
    %561 = vector.broadcast %559 : vector<32x1xf32> to vector<32x64xf32>
    %562 = arith.mulf %561, %560 : vector<32x64xf32>
    %563 = arith.addf %558, %562 : vector<32x64xf32>
    %564 = vector.broadcast %5 : vector<1x64xf32> to vector<32x64xf32>
    %565 = arith.mulf %564, %79 : vector<32x64xf32>
    %566 = arith.addf %563, %565 : vector<32x64xf32>
    %567 = arith.negf %35 : vector<32x64xf32>
    %568 = math.exp %567 : vector<32x64xf32>
    %cst_199 = arith.constant 1.000000e+00 : f32
    %569 = vector.broadcast %cst_199 : f32 to vector<32x64xf32>
    %570 = arith.addf %569, %568 : vector<32x64xf32>
    %571 = arith.divf %569, %570 : vector<32x64xf32>
    %572 = arith.mulf %35, %571 : vector<32x64xf32>
    %573 = arith.mulf %566, %572 : vector<32x64xf32>
    %574 = tpu.concatenate %573, %10 in 1 : vector<32x64xf32>, vector<32x32xf32> -> vector<32x96xf32>
    %575 = arith.truncf %574 : vector<32x96xf32> to vector<32x96xbf16>
    %c96_200 = arith.constant 96 : index
    %c0_201 = arith.constant 0 : index
    %576 = vector.load %arg1[%c96_200, %c0_201] : memref<192x128xbf16, #tpu.memory_space<vmem>>, vector<96x128xbf16>
    %cst_202 = arith.constant dense<0.000000e+00> : vector<32x128xf32>
    %577 = tpu.matmul %575, %576, %cst_202 {dimension_numbers = #tpu.dot_dimension_numbers<[1], [0], [0], [1], [0, 0, 1, 1], [], []>} : vector<32x96xbf16>, vector<96x128xbf16>, vector<32x128xf32> -> vector<32x128xf32>
    %c0_203 = arith.constant 0 : index
    %c0_204 = arith.constant 0 : index
    %578 = vector.load %arg3[%c0_203, %c0_204] : memref<32x128xf32, #tpu.memory_space<vmem>>, vector<32x128xf32>
    tpu.vector_store %arg3[%c0_203, %c0_204], %577 {strides = array<i32>} : memref<32x128xf32, #tpu.memory_space<vmem>>, vector<32x128xf32>,
    return
  }
}

</mosaic_0001>

<llo_original>
// kernel: mamba_decoder_forward.1
$region0: #{mamba_decoder_forward.1}
  #allocation0 [shape = 'u32[]', space=smem, size = 0x4, offset = 0x4, fixed_abs, tag = 'smem constant byte address 0x4 - core index']
  #allocation1 [shape = 'u32[72,128]{1,0:T(1,128)}', space=vmem, size = 0x9000, scoped, tag = 'internal scratch']
  #allocation2 [shape = 'f32[256,64]{1,0:T(8,128)}', space=vmem, size = 0x20000, scoped, tag = 'scratch operand']
  #allocation3 [shape = 'f32[256,64]{1,0:T(8,128)}', space=vmem, size = 0x20000, scoped, tag = 'scratch operand']
  %s0 = inlined_call_operand.vmem [shape: f32[32,32], index: 0, kind: input, shape index: {}]
  %s1 = inlined_call_operand.vmem [shape: bf16[192,128], index: 1, kind: input, shape index: {}]
  %s2 = inlined_call_operand.vmem [shape: f32[24,128], index: 2, kind: input, shape index: {}]
  %s3 = inlined_call_operand.vmem [shape: f32[32,128], index: 3, kind: output, shape index: {}]
  %s4 = sld [smem:[#allocation0]]
  $region22: #{mamba_decoder_forward.1} parent=0
    _
  %s6 = ssub.s32 1, %s4
  %s7 = scalar_select 0, %s6, %s4
  // Predicated region
  $region2: #{mamba_decoder_forward.1} parent=0 // pred_check
    _
  $region3: #{mamba_decoder_forward.1} parent=0 // pred_check_branch
    %9 = sbr.rel (0) target = $region5
  $region4: #{mamba_decoder_forward.1} parent=0 // pred_region
    _
  $region5: #{mamba_decoder_forward.1} parent=0 // pred_fallthru
    _
  // Predicated region
  $region6: #{mamba_decoder_forward.1} parent=0 // pred_check
    _
  $region7: #{mamba_decoder_forward.1} parent=0 // pred_check_branch
    %11 = sbr.rel (0) target = $region9
  $region8: #{mamba_decoder_forward.1} parent=0 // pred_region
    _
  $region9: #{mamba_decoder_forward.1} parent=0 // pred_fallthru
    _
  // Predicated region
  $region10: #{mamba_decoder_forward.1} parent=0 // pred_check
    _
  $region11: #{mamba_decoder_forward.1} parent=0 // pred_check_branch
    %13 = sbr.rel (0) target = $region13
  $region12: #{mamba_decoder_forward.1} parent=0 // pred_region
    _
  $region13: #{mamba_decoder_forward.1} parent=0 // pred_fallthru
    _
  %v15 = vld [vmem:[%s2] sm:$0xff]
  %v16 = vld [vmem:[%s2 + $0x8] sm:$0xff]
  %v17 = vld [vmem:[%s2 + $0x10] sm:$0xff]
  %v18 = vld [vmem:[%s0] sm:$0xff]
  %v19 = vld [vmem:[%s0 + $0x8] sm:$0xff]
  %v20 = vld [vmem:[%s0 + $0x10] sm:$0xff]
  %v21 = vld [vmem:[%s0 + $0x18] sm:$0xff]
  %v22 = vperm.slane %v15, 0
  %v23 = vmul.f32 %v18, %v22
  %v24 = vmul.f32 %v19, %v22
  %v25 = vmul.f32 %v20, %v22
  %v26 = vmul.f32 %v21, %v22
  %vm27 = vcmask 261120
  %v28 = vsel %vm27, %v23, 0.0
  %29 = vadd.xlane.f32.xlu0 %v28
  %v30 = vpop.xlane.xlu0 %29
  %v31 = vsel %vm27, %v24, 0.0
  %32 = vadd.xlane.f32.xlu0 %v31
  %v33 = vpop.xlane.xlu0 %32
  %v34 = vsel %vm27, %v25, 0.0
  %35 = vadd.xlane.f32.xlu0 %v34
  %v36 = vpop.xlane.xlu0 %35
  %v37 = vsel %vm27, %v26, 0.0
  %38 = vadd.xlane.f32.xlu0 %v37
  %v39 = vpop.xlane.xlu0 %38
  %v40 = vrcp.pop 32.0
  %v41 = vmul.f32 32.0, %v40
  %v42 = vsub.f32 1.0, %v41
  %v43 = vmul.f32 %v40, %v42
  %v44 = vadd.f32 %v40, %v43
  %vm45 = vweird.f32 %v40
  %v46 = vsel %vm45, %v40, %v44
  %v47 = vmul.f32 %v30, %v46
  %v48 = vmul.f32 %v33, %v46
  %v49 = vmul.f32 %v36, %v46
  %v50 = vmul.f32 %v39, %v46
  %v51 = vsub.f32 %v23, %v47
  %v52 = vsub.f32 %v24, %v48
  %v53 = vsub.f32 %v25, %v49
  %v54 = vsub.f32 %v26, %v50
  %v55 = vmul.f32 %v51, %v51
  %v56 = vmul.f32 %v52, %v52
  %v57 = vmul.f32 %v53, %v53
  %v58 = vmul.f32 %v54, %v54
  %v59 = vsel %vm27, %v55, 0.0
  %60 = vadd.xlane.f32.xlu0 %v59
  %v61 = vpop.xlane.xlu0 %60
  %v62 = vsel %vm27, %v56, 0.0
  %63 = vadd.xlane.f32.xlu0 %v62
  %v64 = vpop.xlane.xlu0 %63
  %v65 = vsel %vm27, %v57, 0.0
  %66 = vadd.xlane.f32.xlu0 %v65
  %v67 = vpop.xlane.xlu0 %66
  %v68 = vsel %vm27, %v58, 0.0
  %69 = vadd.xlane.f32.xlu0 %v68
  %v70 = vpop.xlane.xlu0 %69
  %v71 = vmul.f32 %v61, %v46
  %v72 = vmul.f32 %v64, %v46
  %v73 = vmul.f32 %v67, %v46
  %v74 = vmul.f32 %v70, %v46
  %v75 = vadd.f32 %v71, 1e-05
  %v76 = vadd.f32 %v72, 1e-05
  %v77 = vadd.f32 %v73, 1e-05
  %v78 = vadd.f32 %v74, 1e-05
  %v79 = vrsqrt.pop %v75
  %v80 = vmul.f32 %v79, %v75
  %v81 = vmul.f32 %v80, %v79
  %v82 = vmul.f32 0.5, %v81
  %v83 = vsub.f32 1.5, %v82
  %v84 = vmul.f32 %v79, %v83
  %vm85 = vweird.f32 %v75
  %vm86 = vweird.f32 %v79
  %vm87 = vmor %vm85, %vm86
  %v88 = vsel %vm87, %v79, %v84
  %v89 = vrsqrt.pop %v76
  %v90 = vmul.f32 %v89, %v76
  %v91 = vmul.f32 %v90, %v89
  %v92 = vmul.f32 0.5, %v91
  %v93 = vsub.f32 1.5, %v92
  %v94 = vmul.f32 %v89, %v93
  %vm95 = vweird.f32 %v76
  %vm96 = vweird.f32 %v89
  %vm97 = vmor %vm95, %vm96
  %v98 = vsel %vm97, %v89, %v94
  %v99 = vrsqrt.pop %v77
  %v100 = vmul.f32 %v99, %v77
  %v101 = vmul.f32 %v100, %v99
  %v102 = vmul.f32 0.5, %v101
  %v103 = vsub.f32 1.5, %v102
  %v104 = vmul.f32 %v99, %v103
  %vm105 = vweird.f32 %v77
  %vm106 = vweird.f32 %v99
  %vm107 = vmor %vm105, %vm106
  %v108 = vsel %vm107, %v99, %v104
  %v109 = vrsqrt.pop %v78
  %v110 = vmul.f32 %v109, %v78
  %v111 = vmul.f32 %v110, %v109
  %v112 = vmul.f32 0.5, %v111
  %v113 = vsub.f32 1.5, %v112
  %v114 = vmul.f32 %v109, %v113
  %vm115 = vweird.f32 %v78
  %vm116 = vweird.f32 %v109
  %vm117 = vmor %vm115, %vm116
  %v118 = vsel %vm117, %v109, %v114
  %v119 = vmul.f32 %v51, %v88
  %v120 = vmul.f32 %v52, %v98
  %v121 = vmul.f32 %v53, %v108
  %v122 = vmul.f32 %v54, %v118
  %v123 = vpack.c.bf16 %v120, %v119
  %v124 = vpack.c.bf16 %v122, %v121
  %v125 = vld [vmem:[%s1] sm:$0xf]
  %v126 = vld [vmem:[%s1 + $0x4] sm:$0xf]
  %v127 = vld [vmem:[%s1 + $0x8] sm:$0xf]
  %v128 = vld [vmem:[%s1 + $0xc] sm:$0xf]
  %v129 = vperm.slane %v15, 1
  %v134 = vunpack.c.l.b16 %v125
  %v135 = vunpack.c.l.b16 %v126
  %v136 = vunpack.c.l.b16 %v127
  %v137 = vunpack.c.l.b16 %v128
  %v138 = vpack.c.b16 %v135, %v134
  %v139 = vpack.c.b16 %v137, %v136
  %v143 = vsel %vm27, %v123, 0
  %v146 = vsel %vm27, %v124, 0
  %148 = vmatpush.bf16.msra.mxu0 0
  %149 = vmatpush.bf16.msra.mxu0 0
  %150 = vmatpush.bf16.msra.mxu0 0
  %151 = vmatpush.bf16.msra.mxu0 0
  %152 = vmatpush.bf16.msra.mxu0 0
  %153 = vmatpush.bf16.msra.mxu0 0
  %154 = vmatpush.bf16.msra.mxu0 %v139
  %155 = vmatpush.bf16.msra.mxu0 %v138
  %156 = vmatmul.bf16.gmra.mxu0 %v143
  %v157 = vpop.f32.mrf.mxu0
  %v158 = vadd.f32 %v129, %v157
  %v159 = vpop.f32.mrf.mxu0
  %v160 = vadd.f32 %v129, %v159
  %161 = vmatmul.bf16.gmra.mxu0 %v146
  %v162 = vpop.f32.mrf.mxu0
  %v163 = vadd.f32 %v129, %v162
  %v164 = vpop.f32.mrf.mxu0
  %v165 = vadd.f32 %v129, %v164
  %166 = vdwg.mxu0
  %v167 = vlaneseq
  %v168 = vshrl.u32 %v167, 7
  %v169 = vadd.s32 %v168, 8
  %v170 = vadd.s32 %v168, 16
  %v171 = vadd.s32 %v168, 24
  %vm172 = vcmp.ge.s32.totalorder %v168, 16
  %vm173 = vcmp.ge.s32.totalorder %v169, 16
  %vm174 = vcmp.ge.s32.totalorder %v170, 16
  %vm175 = vcmp.ge.s32.totalorder %v171, 16
  %v176 = vsub.s32 %v168, 16
  %v177 = vsub.s32 %v169, 16
  %v178 = vsub.s32 %v171, 16
  %v179 = vsel %vm172, %v176, %v168
  %v180 = vsel %vm173, %v177, %v169
  %v181 = vsel %vm174, %v168, %v170
  %v182 = vsel %vm175, %v178, %v171
  %v183 = vperm.slane %v16, 3
  %v184 = vmul.f32 %v183, %v158
  %v185 = vmul.f32 %v183, %v160
  %v186 = vmul.f32 %v183, %v163
  %v187 = vmul.f32 %v183, %v165
  %v188 = vrot.slane %v158, 5
  %v189 = vrot.slane %v160, 5
  %v190 = vrot.slane %v163, 5
  %v191 = vrot.slane %v165, 5
  %vm192 = vcmp.lt.s32.totalorder %v168, 3
  %v193 = vsel %vm192, %v190, %v191
  %v194 = vsel %vm192, %v189, %v190
  %v195 = vsel %vm192, %v188, %v189
  %v196 = vsel %vm192, %v191, %v188
  %vm197 = vcmp.ge.s32.totalorder %v179, 3
  %vm198 = vcmp.ge.s32.totalorder %v180, 3
  %vm199 = vcmp.ge.s32.totalorder %v181, 3
  %vm200 = vcmp.ge.s32.totalorder %v182, 3
  %v201 = vsel %vm197, %v196, 0.0
  %v202 = vsel %vm198, %v195, 0.0
  %v203 = vsel %vm199, %v194, 0.0
  %v204 = vsel %vm200, %v193, 0.0
  %v205 = vperm.slane %v16, 0
  %v206 = vmul.f32 %v205, %v201
  %v207 = vmul.f32 %v205, %v202
  %v208 = vmul.f32 %v205, %v203
  %v209 = vmul.f32 %v205, %v204
  %v210 = vadd.f32 %v184, %v206
  %v211 = vadd.f32 %v185, %v207
  %v212 = vadd.f32 %v186, %v208
  %v213 = vadd.f32 %v187, %v209
  %v214 = vrot.slane %v158, 6
  %v215 = vrot.slane %v160, 6
  %v216 = vrot.slane %v163, 6
  %v217 = vrot.slane %v165, 6
  %vm218 = vcmp.lt.s32.totalorder %v168, 2
  %v219 = vsel %vm218, %v216, %v217
  %v220 = vsel %vm218, %v215, %v216
  %v221 = vsel %vm218, %v214, %v215
  %v222 = vsel %vm218, %v217, %v214
  %vm223 = vcmp.ge.s32.totalorder %v179, 2
  %vm224 = vcmp.ge.s32.totalorder %v180, 2
  %vm225 = vcmp.ge.s32.totalorder %v181, 2
  %vm226 = vcmp.ge.s32.totalorder %v182, 2
  %v227 = vsel %vm223, %v222, 0.0
  %v228 = vsel %vm224, %v221, 0.0
  %v229 = vsel %vm225, %v220, 0.0
  %v230 = vsel %vm226, %v219, 0.0
  %v231 = vperm.slane %v16, 1
  %v232 = vmul.f32 %v231, %v227
  %v233 = vmul.f32 %v231, %v228
  %v234 = vmul.f32 %v231, %v229
  %v235 = vmul.f32 %v231, %v230
  %v236 = vadd.f32 %v210, %v232
  %v237 = vadd.f32 %v211, %v233
  %v238 = vadd.f32 %v212, %v234
  %v239 = vadd.f32 %v213, %v235
  %v240 = vrot.slane %v158, 7
  %v241 = vrot.slane %v160, 7
  %v242 = vrot.slane %v163, 7
  %v243 = vrot.slane %v165, 7
  %vm244 = vcmp.lt.s32.totalorder %v168, 1
  %v245 = vsel %vm244, %v242, %v243
  %v246 = vsel %vm244, %v241, %v242
  %v247 = vsel %vm244, %v240, %v241
  %v248 = vsel %vm244, %v243, %v240
  %vm249 = vcmp.ge.s32.totalorder %v179, 1
  %vm250 = vcmp.ge.s32.totalorder %v180, 1
  %vm251 = vcmp.ge.s32.totalorder %v181, 1
  %vm252 = vcmp.ge.s32.totalorder %v182, 1
  %v253 = vsel %vm249, %v248, 0.0
  %v254 = vsel %vm250, %v247, 0.0
  %v255 = vsel %vm251, %v246, 0.0
  %v256 = vsel %vm252, %v245, 0.0
  %v257 = vperm.slane %v16, 2
  %v258 = vmul.f32 %v257, %v253
  %v259 = vmul.f32 %v257, %v254
  %v260 = vmul.f32 %v257, %v255
  %v261 = vmul.f32 %v257, %v256
  %v262 = vadd.f32 %v236, %v258
  %v263 = vadd.f32 %v237, %v259
  %v264 = vadd.f32 %v238, %v260
  %v265 = vadd.f32 %v239, %v261
  %v266 = vperm.slane %v15, 2
  %v267 = vadd.f32 %v262, %v266
  %v268 = vadd.f32 %v263, %v266
  %v269 = vadd.f32 %v264, %v266
  %v270 = vadd.f32 %v265, %v266
  %v271 = vxor.u32 %v267, 2147483648
  %v272 = vxor.u32 %v268, 2147483648
  %v273 = vxor.u32 %v269, 2147483648
  %v274 = vxor.u32 %v270, 2147483648
  %v275 = vmul.f32 %v271, 1.442695
  %v276 = vpow.pop %v275
  %v277 = vmul.f32 %v272, 1.442695
  %v278 = vpow.pop %v277
  %v279 = vmul.f32 %v273, 1.442695
  %v280 = vpow.pop %v279
  %v281 = vmul.f32 %v274, 1.442695
  %v282 = vpow.pop %v281
  %v283 = vadd.f32 %v276, 1.0
  %v284 = vadd.f32 %v278, 1.0
  %v285 = vadd.f32 %v280, 1.0
  %v286 = vadd.f32 %v282, 1.0
  %v287 = vrcp.pop %v283
  %v288 = vmul.f32 %v283, %v287
  %v289 = vsub.f32 1.0, %v288
  %v290 = vmul.f32 %v287, %v289
  %v291 = vadd.f32 %v287, %v290
  %vm292 = vweird.f32 %v283
  %vm293 = vweird.f32 %v287
  %vm294 = vmor %vm292, %vm293
  %v295 = vsel %vm294, %v287, %v291
  %v296 = vand.u32 2147483647, %v283
  %vm297 = vcmp.eq.f32.partialorder %v296, 8.507059e+37
  %v298 = vand.u32 %v283, 2147483648
  %v299 = vor.u32 1.1754944e-38, %v298
  %v300 = vsel %vm297, %v299, %v295
  %v301 = vmul.f32 1.0, %v300
  %v302 = vrcp.pop %v284
  %v303 = vmul.f32 %v284, %v302
  %v304 = vsub.f32 1.0, %v303
  %v305 = vmul.f32 %v302, %v304
  %v306 = vadd.f32 %v302, %v305
  %vm307 = vweird.f32 %v284
  %vm308 = vweird.f32 %v302
  %vm309 = vmor %vm307, %vm308
  %v310 = vsel %vm309, %v302, %v306
  %v311 = vand.u32 2147483647, %v284
  %vm312 = vcmp.eq.f32.partialorder %v311, 8.507059e+37
  %v313 = vand.u32 %v284, 2147483648
  %v314 = vor.u32 1.1754944e-38, %v313
  %v315 = vsel %vm312, %v314, %v310
  %v316 = vmul.f32 1.0, %v315
  %v317 = vrcp.pop %v285
  %v318 = vmul.f32 %v285, %v317
  %v319 = vsub.f32 1.0, %v318
  %v320 = vmul.f32 %v317, %v319
  %v321 = vadd.f32 %v317, %v320
  %vm322 = vweird.f32 %v285
  %vm323 = vweird.f32 %v317
  %vm324 = vmor %vm322, %vm323
  %v325 = vsel %vm324, %v317, %v321
  %v326 = vand.u32 2147483647, %v285
  %vm327 = vcmp.eq.f32.partialorder %v326, 8.507059e+37
  %v328 = vand.u32 %v285, 2147483648
  %v329 = vor.u32 1.1754944e-38, %v328
  %v330 = vsel %vm327, %v329, %v325
  %v331 = vmul.f32 1.0, %v330
  %v332 = vrcp.pop %v286
  %v333 = vmul.f32 %v286, %v332
  %v334 = vsub.f32 1.0, %v333
  %v335 = vmul.f32 %v332, %v334
  %v336 = vadd.f32 %v332, %v335
  %vm337 = vweird.f32 %v286
  %vm338 = vweird.f32 %v332
  %vm339 = vmor %vm337, %vm338
  %v340 = vsel %vm339, %v332, %v336
  %v341 = vand.u32 2147483647, %v286
  %vm342 = vcmp.eq.f32.partialorder %v341, 8.507059e+37
  %v343 = vand.u32 %v286, 2147483648
  %v344 = vor.u32 1.1754944e-38, %v343
  %v345 = vsel %vm342, %v344, %v340
  %v346 = vmul.f32 1.0, %v345
  %v347 = vmul.f32 %v267, %v301
  %v348 = vmul.f32 %v268, %v316
  %v349 = vmul.f32 %v269, %v331
  %v350 = vmul.f32 %v270, %v346
  %v351 = vpack.c.bf16 %v348, %v347
  %v352 = vpack.c.bf16 %v350, %v349
  %v353 = vld [vmem:[%s1 + $0x10] sm:$0xf]
  %v354 = vld [vmem:[%s1 + $0x14] sm:$0xf]
  %v355 = vld [vmem:[%s1 + $0x18] sm:$0xf]
  %v356 = vld [vmem:[%s1 + $0x1c] sm:$0xf]
  %v357 = vld [vmem:[%s1 + $0x20] sm:$0xf]
  %v358 = vld [vmem:[%s1 + $0x24] sm:$0xf]
  %v359 = vld [vmem:[%s1 + $0x28] sm:$0xf]
  %v360 = vld [vmem:[%s1 + $0x2c] sm:$0xf]
  %v369 = vunpack.c.l.b16 %v353
  %v370 = vunpack.c.l.b16 %v354
  %v371 = vunpack.c.l.b16 %v355
  %v372 = vunpack.c.l.b16 %v356
  %v373 = vunpack.c.l.b16 %v357
  %v374 = vunpack.c.l.b16 %v358
  %v375 = vunpack.c.l.b16 %v359
  %v376 = vunpack.c.l.b16 %v360
  %v377 = vpack.c.b16 %v370, %v369
  %v378 = vpack.c.b16 %v372, %v371
  %v379 = vpack.c.b16 %v374, %v373
  %v380 = vpack.c.b16 %v376, %v375
  %vm385 = vcmask 523264
  %v387 = vsel %vm385, %v351, 0
  %v390 = vsel %vm385, %v352, 0
  %392 = vmatpush.bf16.msra.mxu0 0
  %393 = vmatpush.bf16.msra.mxu0 0
  %394 = vmatpush.bf16.msra.mxu0 0
  %395 = vmatpush.bf16.msra.mxu0 0
  %396 = vmatpush.bf16.msra.mxu0 %v380
  %397 = vmatpush.bf16.msra.mxu0 %v379
  %398 = vmatpush.bf16.msra.mxu0 %v378
  %399 = vmatpush.bf16.msra.mxu0 %v377
  %400 = vmatmul.bf16.gmra.mxu0 %v387
  %v401 = vpop.f32.mrf.mxu0
  %v402 = vadd.f32 0.0, %v401
  %v403 = vpop.f32.mrf.mxu0
  %v404 = vadd.f32 0.0, %v403
  %405 = vmatmul.bf16.gmra.mxu0 %v390
  %v406 = vpop.f32.mrf.mxu0
  %v407 = vadd.f32 0.0, %v406
  %v408 = vpop.f32.mrf.mxu0
  %v409 = vadd.f32 0.0, %v408
  %410 = vdwg.mxu0
  %v411 = vperm.slane %v15, 3
  %v412 = vadd.f32 %v402, %v411
  %v413 = vadd.f32 %v404, %v411
  %v414 = vadd.f32 %v407, %v411
  %v415 = vadd.f32 %v409, %v411
  %v416 = vmax.f32 %v412, 0.0
  %v417 = vmax.f32 %v413, 0.0
  %v418 = vmax.f32 %v414, 0.0
  %v419 = vmax.f32 %v415, 0.0
  %vm420 = vcmp.ne.f32.partialorder %v412, %v412
  %vm421 = vcmp.ne.f32.partialorder %v413, %v413
  %vm422 = vcmp.ne.f32.partialorder %v414, %v414
  %vm423 = vcmp.ne.f32.partialorder %v415, %v415
  %v424 = vadd.f32 %v412, 0.0
  %v425 = vadd.f32 %v413, 0.0
  %v426 = vadd.f32 %v414, 0.0
  %v427 = vadd.f32 %v415, 0.0
  %v428 = vand.u32 2147483647, %v412
  %v429 = vand.u32 2147483647, %v413
  %v430 = vand.u32 2147483647, %v414
  %v431 = vand.u32 2147483647, %v415
  %v432 = vsub.f32 0.0, %v428
  %v433 = vsub.f32 0.0, %v429
  %v434 = vsub.f32 0.0, %v430
  %v435 = vsub.f32 0.0, %v431
  %v436 = vmul.f32 %v432, 1.442695
  %v437 = vpow.pop %v436
  %v438 = vmul.f32 %v433, 1.442695
  %v439 = vpow.pop %v438
  %v440 = vmul.f32 %v434, 1.442695
  %v441 = vpow.pop %v440
  %v442 = vmul.f32 %v435, 1.442695
  %v443 = vpow.pop %v442
  %v444 = vadd.f32 %v437, 1.0
  %v445 = vlog2.pop %v444
  %v446 = vmul.f32 %v445, 0.6931472
  %v447 = vmul.f32 -0.5, %v437
  %v448 = vadd.f32 %v447, 1.0
  %v449 = vmul.f32 %v448, %v437
  %v450 = vand.u32 2147483647, %v437
  %vm451 = vcmp.lt.f32.partialorder %v450, 0.0004427343
  %v452 = vsel %vm451, %v449, %v446
  %v453 = vadd.f32 %v439, 1.0
  %v454 = vlog2.pop %v453
  %v455 = vmul.f32 %v454, 0.6931472
  %v456 = vmul.f32 -0.5, %v439
  %v457 = vadd.f32 %v456, 1.0
  %v458 = vmul.f32 %v457, %v439
  %v459 = vand.u32 2147483647, %v439
  %vm460 = vcmp.lt.f32.partialorder %v459, 0.0004427343
  %v461 = vsel %vm460, %v458, %v455
  %v462 = vadd.f32 %v441, 1.0
  %v463 = vlog2.pop %v462
  %v464 = vmul.f32 %v463, 0.6931472
  %v465 = vmul.f32 -0.5, %v441
  %v466 = vadd.f32 %v465, 1.0
  %v467 = vmul.f32 %v466, %v441
  %v468 = vand.u32 2147483647, %v441
  %vm469 = vcmp.lt.f32.partialorder %v468, 0.0004427343
  %v470 = vsel %vm469, %v467, %v464
  %v471 = vadd.f32 %v443, 1.0
  %v472 = vlog2.pop %v471
  %v473 = vmul.f32 %v472, 0.6931472
  %v474 = vmul.f32 -0.5, %v443
  %v475 = vadd.f32 %v474, 1.0
  %v476 = vmul.f32 %v475, %v443
  %v477 = vand.u32 2147483647, %v443
  %vm478 = vcmp.lt.f32.partialorder %v477, 0.0004427343
  %v479 = vsel %vm478, %v476, %v473
  %v480 = vadd.f32 %v416, %v452
  %v481 = vadd.f32 %v417, %v461
  %v482 = vadd.f32 %v418, %v470
  %v483 = vadd.f32 %v419, %v479
  %v484 = vsel %vm420, %v424, %v480
  %v485 = vsel %vm421, %v425, %v481
  %v486 = vsel %vm422, %v426, %v482
  %v487 = vsel %vm423, %v427, %v483
  %492 = vrot.lane.b32.xlu0 %v402, 64
  %v493 = vpop.permute.xlu0 %492
  %494 = vrot.lane.b32.xlu0 %v404, 64
  %v495 = vpop.permute.xlu0 %494
  %496 = vrot.lane.b32.xlu0 %v407, 64
  %v497 = vpop.permute.xlu0 %496
  %498 = vrot.lane.b32.xlu0 %v409, 64
  %v499 = vpop.permute.xlu0 %498
  %504 = vxpose.xlu0.b32.start [1/16] %v493, 128
  %505 = vxpose.xlu0.b32.cont [2/16] %v495, 128
  %506 = vxpose.xlu0.b32.cont [3/16] %v497, 128
  %507 = vxpose.xlu0.b32.cont [4/16] %v499, 128
  %508 = vxpose.xlu0.b32.cont [5/16] 0.0, 128
  %509 = vxpose.xlu0.b32.cont [6/16] 0.0, 128
  %510 = vxpose.xlu0.b32.cont [7/16] 0.0, 128
  %511 = vxpose.xlu0.b32.cont [8/16] 0.0, 128
  %512 = vxpose.xlu0.b32.cont [9/16] 0.0, 128
  %513 = vxpose.xlu0.b32.cont [10/16] 0.0, 128
  %514 = vxpose.xlu0.b32.cont [11/16] 0.0, 128
  %515 = vxpose.xlu0.b32.cont [12/16] 0.0, 128
  %516 = vxpose.xlu0.b32.cont [13/16] 0.0, 128
  %517 = vxpose.xlu0.b32.cont [14/16] 0.0, 128
  %518 = vxpose.xlu0.b32.cont [15/16] 0.0, 128
  %519 = vxpose.xlu0.b32.end [16/16] 0.0, 128
  %v520 = vpop.trf.xlu0
  %v521 = vpop.trf.xlu0
  %v522 = vpop.trf.xlu0
  %v523 = vpop.trf.xlu0
  %v524 = vpop.trf.xlu0
  %v525 = vpop.trf.xlu0
  %v526 = vpop.trf.xlu0
  %v527 = vpop.trf.xlu0
  %v528 = vpop.trf.xlu0
  %v529 = vpop.trf.xlu0
  %v530 = vpop.trf.xlu0
  %v531 = vpop.trf.xlu0
  %v532 = vpop.trf.xlu0
  %v533 = vpop.trf.xlu0
  %v534 = vpop.trf.xlu0
  %v535 = vpop.trf.xlu0
  %v536 = vperm.slane %v484, 0
  %v537 = vmul.f32 %v536, %v17
  %538 = vst.msk [vmem:[#allocation2] sm:$0xff] %vm385, %v537
  %v539 = vperm.slane %v484, 1
  %v540 = vmul.f32 %v539, %v17
  %541 = vst.msk [vmem:[#allocation2 + $0x8] sm:$0xff] %vm385, %v540
  %v542 = vperm.slane %v484, 2
  %v543 = vmul.f32 %v542, %v17
  %544 = vst.msk [vmem:[#allocation2 + $0x10] sm:$0xff] %vm385, %v543
  %v545 = vperm.slane %v484, 3
  %v546 = vmul.f32 %v545, %v17
  %547 = vst.msk [vmem:[#allocation2 + $0x18] sm:$0xff] %vm385, %v546
  %v548 = vperm.slane %v484, 4
  %v549 = vmul.f32 %v548, %v17
  %550 = vst.msk [vmem:[#allocation2 + $0x20] sm:$0xff] %vm385, %v549
  %v551 = vperm.slane %v484, 5
  %v552 = vmul.f32 %v551, %v17
  %553 = vst.msk [vmem:[#allocation2 + $0x28] sm:$0xff] %vm385, %v552
  %v554 = vperm.slane %v484, 6
  %v555 = vmul.f32 %v554, %v17
  %556 = vst.msk [vmem:[#allocation2 + $0x30] sm:$0xff] %vm385, %v555
  %v557 = vperm.slane %v484, 7
  %v558 = vmul.f32 %v557, %v17
  %559 = vst.msk [vmem:[#allocation2 + $0x38] sm:$0xff] %vm385, %v558
  %v560 = vperm.slane %v485, 0
  %v561 = vmul.f32 %v560, %v17
  %562 = vst.msk [vmem:[#allocation2 + $0x40] sm:$0xff] %vm385, %v561
  %v563 = vperm.slane %v485, 1
  %v564 = vmul.f32 %v563, %v17
  %565 = vst.msk [vmem:[#allocation2 + $0x48] sm:$0xff] %vm385, %v564
  %v566 = vperm.slane %v485, 2
  %v567 = vmul.f32 %v566, %v17
  %568 = vst.msk [vmem:[#allocation2 + $0x50] sm:$0xff] %vm385, %v567
  %v569 = vperm.slane %v485, 3
  %v570 = vmul.f32 %v569, %v17
  %571 = vst.msk [vmem:[#allocation2 + $0x58] sm:$0xff] %vm385, %v570
  %v572 = vperm.slane %v485, 4
  %v573 = vmul.f32 %v572, %v17
  %574 = vst.msk [vmem:[#allocation2 + $0x60] sm:$0xff] %vm385, %v573
  %v575 = vperm.slane %v485, 5
  %v576 = vmul.f32 %v575, %v17
  %577 = vst.msk [vmem:[#allocation2 + $0x68] sm:$0xff] %vm385, %v576
  %v578 = vperm.slane %v485, 6
  %v579 = vmul.f32 %v578, %v17
  %580 = vst.msk [vmem:[#allocation2 + $0x70] sm:$0xff] %vm385, %v579
  %v581 = vperm.slane %v485, 7
  %v582 = vmul.f32 %v581, %v17
  %583 = vst.msk [vmem:[#allocation2 + $0x78] sm:$0xff] %vm385, %v582
  %v584 = vperm.slane %v486, 0
  %v585 = vmul.f32 %v584, %v17
  %586 = vst.msk [vmem:[#allocation2 + $0x80] sm:$0xff] %vm385, %v585
  %v587 = vperm.slane %v486, 1
  %v588 = vmul.f32 %v587, %v17
  %589 = vst.msk [vmem:[#allocation2 + $0x88] sm:$0xff] %vm385, %v588
  %v590 = vperm.slane %v486, 2
  %v591 = vmul.f32 %v590, %v17
  %592 = vst.msk [vmem:[#allocation2 + $0x90] sm:$0xff] %vm385, %v591
  %v593 = vperm.slane %v486, 3
  %v594 = vmul.f32 %v593, %v17
  %595 = vst.msk [vmem:[#allocation2 + $0x98] sm:$0xff] %vm385, %v594
  %v596 = vperm.slane %v486, 4
  %v597 = vmul.f32 %v596, %v17
  %598 = vst.msk [vmem:[#allocation2 + $0xa0] sm:$0xff] %vm385, %v597
  %v599 = vperm.slane %v486, 5
  %v600 = vmul.f32 %v599, %v17
  %601 = vst.msk [vmem:[#allocation2 + $0xa8] sm:$0xff] %vm385, %v600
  %v602 = vperm.slane %v486, 6
  %v603 = vmul.f32 %v602, %v17
  %604 = vst.msk [vmem:[#allocation2 + $0xb0] sm:$0xff] %vm385, %v603
  %v605 = vperm.slane %v486, 7
  %v606 = vmul.f32 %v605, %v17
  %607 = vst.msk [vmem:[#allocation2 + $0xb8] sm:$0xff] %vm385, %v606
  %v608 = vperm.slane %v487, 0
  %v609 = vmul.f32 %v608, %v17
  %610 = vst.msk [vmem:[#allocation2 + $0xc0] sm:$0xff] %vm385, %v609
  %v611 = vperm.slane %v487, 1
  %v612 = vmul.f32 %v611, %v17
  %613 = vst.msk [vmem:[#allocation2 + $0xc8] sm:$0xff] %vm385, %v612
  %v614 = vperm.slane %v487, 2
  %v615 = vmul.f32 %v614, %v17
  %616 = vst.msk [vmem:[#allocation2 + $0xd0] sm:$0xff] %vm385, %v615
  %v617 = vperm.slane %v487, 3
  %v618 = vmul.f32 %v617, %v17
  %619 = vst.msk [vmem:[#allocation2 + $0xd8] sm:$0xff] %vm385, %v618
  %v620 = vperm.slane %v487, 4
  %v621 = vmul.f32 %v620, %v17
  %622 = vst.msk [vmem:[#allocation2 + $0xe0] sm:$0xff] %vm385, %v621
  %v623 = vperm.slane %v487, 5
  %v624 = vmul.f32 %v623, %v17
  %625 = vst.msk [vmem:[#allocation2 + $0xe8] sm:$0xff] %vm385, %v624
  %v626 = vperm.slane %v487, 6
  %v627 = vmul.f32 %v626, %v17
  %628 = vst.msk [vmem:[#allocation2 + $0xf0] sm:$0xff] %vm385, %v627
  %v629 = vperm.slane %v487, 7
  %v630 = vmul.f32 %v629, %v17
  %631 = vst.msk [vmem:[#allocation2 + $0xf8] sm:$0xff] %vm385, %v630
  %v632 = vld [vmem:[#allocation2] sm:$0xff]
  %v633 = vld [vmem:[#allocation2 + $0x8] sm:$0xff]
  %v634 = vld [vmem:[#allocation2 + $0x10] sm:$0xff]
  %v635 = vld [vmem:[#allocation2 + $0x18] sm:$0xff]
  %v636 = vld [vmem:[#allocation2 + $0x20] sm:$0xff]
  %v637 = vld [vmem:[#allocation2 + $0x28] sm:$0xff]
  %v638 = vld [vmem:[#allocation2 + $0x30] sm:$0xff]
  %v639 = vld [vmem:[#allocation2 + $0x38] sm:$0xff]
  %v640 = vld [vmem:[#allocation2 + $0x40] sm:$0xff]
  %v641 = vld [vmem:[#allocation2 + $0x48] sm:$0xff]
  %v642 = vld [vmem:[#allocation2 + $0x50] sm:$0xff]
  %v643 = vld [vmem:[#allocation2 + $0x58] sm:$0xff]
  %v644 = vld [vmem:[#allocation2 + $0x60] sm:$0xff]
  %v645 = vld [vmem:[#allocation2 + $0x68] sm:$0xff]
  %v646 = vld [vmem:[#allocation2 + $0x70] sm:$0xff]
  %v647 = vld [vmem:[#allocation2 + $0x78] sm:$0xff]
  %v648 = vld [vmem:[#allocation2 + $0x80] sm:$0xff]
  %v649 = vld [vmem:[#allocation2 + $0x88] sm:$0xff]
  %v650 = vld [vmem:[#allocation2 + $0x90] sm:$0xff]
  %v651 = vld [vmem:[#allocation2 + $0x98] sm:$0xff]
  %v652 = vld [vmem:[#allocation2 + $0xa0] sm:$0xff]
  %v653 = vld [vmem:[#allocation2 + $0xa8] sm:$0xff]
  %v654 = vld [vmem:[#allocation2 + $0xb0] sm:$0xff]
  %v655 = vld [vmem:[#allocation2 + $0xb8] sm:$0xff]
  %v656 = vld [vmem:[#allocation2 + $0xc0] sm:$0xff]
  %v657 = vld [vmem:[#allocation2 + $0xc8] sm:$0xff]
  %v658 = vld [vmem:[#allocation2 + $0xd0] sm:$0xff]
  %v659 = vld [vmem:[#allocation2 + $0xd8] sm:$0xff]
  %v660 = vld [vmem:[#allocation2 + $0xe0] sm:$0xff]
  %v661 = vld [vmem:[#allocation2 + $0xe8] sm:$0xff]
  %v662 = vld [vmem:[#allocation2 + $0xf0] sm:$0xff]
  %v663 = vld [vmem:[#allocation2 + $0xf8] sm:$0xff]
  %v664 = vmul.f32 %v632, 1.442695
  %v665 = vpow.pop %v664
  %v666 = vmul.f32 %v633, 1.442695
  %v667 = vpow.pop %v666
  %v668 = vmul.f32 %v634, 1.442695
  %v669 = vpow.pop %v668
  %v670 = vmul.f32 %v635, 1.442695
  %v671 = vpow.pop %v670
  %v672 = vmul.f32 %v636, 1.442695
  %v673 = vpow.pop %v672
  %v674 = vmul.f32 %v637, 1.442695
  %v675 = vpow.pop %v674
  %v676 = vmul.f32 %v638, 1.442695
  %v677 = vpow.pop %v676
  %v678 = vmul.f32 %v639, 1.442695
  %v679 = vpow.pop %v678
  %v680 = vmul.f32 %v640, 1.442695
  %v681 = vpow.pop %v680
  %v682 = vmul.f32 %v641, 1.442695
  %v683 = vpow.pop %v682
  %v684 = vmul.f32 %v642, 1.442695
  %v685 = vpow.pop %v684
  %v686 = vmul.f32 %v643, 1.442695
  %v687 = vpow.pop %v686
  %v688 = vmul.f32 %v644, 1.442695
  %v689 = vpow.pop %v688
  %v690 = vmul.f32 %v645, 1.442695
  %v691 = vpow.pop %v690
  %v692 = vmul.f32 %v646, 1.442695
  %v693 = vpow.pop %v692
  %v694 = vmul.f32 %v647, 1.442695
  %v695 = vpow.pop %v694
  %v696 = vmul.f32 %v648, 1.442695
  %v697 = vpow.pop %v696
  %v698 = vmul.f32 %v649, 1.442695
  %v699 = vpow.pop %v698
  %v700 = vmul.f32 %v650, 1.442695
  %v701 = vpow.pop %v700
  %v702 = vmul.f32 %v651, 1.442695
  %v703 = vpow.pop %v702
  %v704 = vmul.f32 %v652, 1.442695
  %v705 = vpow.pop %v704
  %v706 = vmul.f32 %v653, 1.442695
  %v707 = vpow.pop %v706
  %v708 = vmul.f32 %v654, 1.442695
  %v709 = vpow.pop %v708
  %v710 = vmul.f32 %v655, 1.442695
  %v711 = vpow.pop %v710
  %v712 = vmul.f32 %v656, 1.442695
  %v713 = vpow.pop %v712
  %v714 = vmul.f32 %v657, 1.442695
  %v715 = vpow.pop %v714
  %v716 = vmul.f32 %v658, 1.442695
  %v717 = vpow.pop %v716
  %v718 = vmul.f32 %v659, 1.442695
  %v719 = vpow.pop %v718
  %v720 = vmul.f32 %v660, 1.442695
  %v721 = vpow.pop %v720
  %v722 = vmul.f32 %v661, 1.442695
  %v723 = vpow.pop %v722
  %v724 = vmul.f32 %v662, 1.442695
  %v725 = vpow.pop %v724
  %v726 = vmul.f32 %v663, 1.442695
  %v727 = vpow.pop %v726
  %728 = vst.msk [vmem:[#allocation2] sm:$0xff] %vm385, %v665
  %729 = vst.msk [vmem:[#allocation2 + $0x8] sm:$0xff] %vm385, %v667
  %730 = vst.msk [vmem:[#allocation2 + $0x10] sm:$0xff] %vm385, %v669
  %731 = vst.msk [vmem:[#allocation2 + $0x18] sm:$0xff] %vm385, %v671
  %732 = vst.msk [vmem:[#allocation2 + $0x20] sm:$0xff] %vm385, %v673
  %733 = vst.msk [vmem:[#allocation2 + $0x28] sm:$0xff] %vm385, %v675
  %734 = vst.msk [vmem:[#allocation2 + $0x30] sm:$0xff] %vm385, %v677
  %735 = vst.msk [vmem:[#allocation2 + $0x38] sm:$0xff] %vm385, %v679
  %736 = vst.msk [vmem:[#allocation2 + $0x40] sm:$0xff] %vm385, %v681
  %737 = vst.msk [vmem:[#allocation2 + $0x48] sm:$0xff] %vm385, %v683
  %738 = vst.msk [vmem:[#allocation2 + $0x50] sm:$0xff] %vm385, %v685
  %739 = vst.msk [vmem:[#allocation2 + $0x58] sm:$0xff] %vm385, %v687
  %740 = vst.msk [vmem:[#allocation2 + $0x60] sm:$0xff] %vm385, %v689
  %741 = vst.msk [vmem:[#allocation2 + $0x68] sm:$0xff] %vm385, %v691
  %742 = vst.msk [vmem:[#allocation2 + $0x70] sm:$0xff] %vm385, %v693
  %743 = vst.msk [vmem:[#allocation2 + $0x78] sm:$0xff] %vm385, %v695
  %744 = vst.msk [vmem:[#allocation2 + $0x80] sm:$0xff] %vm385, %v697
  %745 = vst.msk [vmem:[#allocation2 + $0x88] sm:$0xff] %vm385, %v699
  %746 = vst.msk [vmem:[#allocation2 + $0x90] sm:$0xff] %vm385, %v701
  %747 = vst.msk [vmem:[#allocation2 + $0x98] sm:$0xff] %vm385, %v703
  %748 = vst.msk [vmem:[#allocation2 + $0xa0] sm:$0xff] %vm385, %v705
  %749 = vst.msk [vmem:[#allocation2 + $0xa8] sm:$0xff] %vm385, %v707
  %750 = vst.msk [vmem:[#allocation2 + $0xb0] sm:$0xff] %vm385, %v709
  %751 = vst.msk [vmem:[#allocation2 + $0xb8] sm:$0xff] %vm385, %v711
  %752 = vst.msk [vmem:[#allocation2 + $0xc0] sm:$0xff] %vm385, %v713
  %753 = vst.msk [vmem:[#allocation2 + $0xc8] sm:$0xff] %vm385, %v715
  %754 = vst.msk [vmem:[#allocation2 + $0xd0] sm:$0xff] %vm385, %v717
  %755 = vst.msk [vmem:[#allocation2 + $0xd8] sm:$0xff] %vm385, %v719
  %756 = vst.msk [vmem:[#allocation2 + $0xe0] sm:$0xff] %vm385, %v721
  %757 = vst.msk [vmem:[#allocation2 + $0xe8] sm:$0xff] %vm385, %v723
  %758 = vst.msk [vmem:[#allocation2 + $0xf0] sm:$0xff] %vm385, %v725
  %759 = vst.msk [vmem:[#allocation2 + $0xf8] sm:$0xff] %vm385, %v727
  %v760 = vmul.f32 %v484, %v347
  %v761 = vmul.f32 %v485, %v348
  %v762 = vmul.f32 %v486, %v349
  %v763 = vmul.f32 %v487, %v350
  %v764 = vld [vmem:[#allocation2] sm:$0xff]
  %v765 = vmul.f32 %v764, 0.0
  %767 = vset.pattern.permute.xlu0 0
  %768 = vperm.xlu0 %767, %v520
  %v769 = vpop.permute.xlu0 %768
  %v771 = vperm.slane %v760, 0
  %v772 = vmul.f32 %v769, %v771
  %v773 = vadd.f32 %v765, %v772
  %v774 = vld [vmem:[#allocation2 + $0x80] sm:$0xff]
  %v775 = vmul.f32 %v774, 0.0
  %776 = vset.pattern.permute.xlu0 16
  %777 = vperm.xlu0 %776, %v520
  %v778 = vpop.permute.xlu0 %777
  %v780 = vperm.slane %v762, 0
  %v781 = vmul.f32 %v778, %v780
  %v782 = vadd.f32 %v775, %v781
  %783 = vst.msk [vmem:[#allocation3] sm:$0xff] %vm385, %v773
  %784 = vst.msk [vmem:[#allocation3 + $0x80] sm:$0xff] %vm385, %v782
  %v785 = vld [vmem:[#allocation2 + $0x8] sm:$0xff]
  %v786 = vmul.f32 %v785, %v773
  %787 = vset.pattern.permute.xlu0 1
  %788 = vperm.xlu0 %787, %v520
  %v789 = vpop.permute.xlu0 %788
  %v791 = vperm.slane %v760, 1
  %v792 = vmul.f32 %v789, %v791
  %v793 = vadd.f32 %v786, %v792
  %v794 = vld [vmem:[#allocation2 + $0x88] sm:$0xff]
  %v795 = vmul.f32 %v794, %v782
  %796 = vset.pattern.permute.xlu0 17
  %797 = vperm.xlu0 %796, %v520
  %v798 = vpop.permute.xlu0 %797
  %v800 = vperm.slane %v762, 1
  %v801 = vmul.f32 %v798, %v800
  %v802 = vadd.f32 %v795, %v801
  %803 = vst.msk [vmem:[#allocation3 + $0x8] sm:$0xff] %vm385, %v793
  %804 = vst.msk [vmem:[#allocation3 + $0x88] sm:$0xff] %vm385, %v802
  %v805 = vld [vmem:[#allocation2 + $0x10] sm:$0xff]
  %v806 = vmul.f32 %v805, %v793
  %807 = vset.pattern.permute.xlu0 2
  %808 = vperm.xlu0 %807, %v520
  %v809 = vpop.permute.xlu0 %808
  %v811 = vperm.slane %v760, 2
  %v812 = vmul.f32 %v809, %v811
  %v813 = vadd.f32 %v806, %v812
  %v814 = vld [vmem:[#allocation2 + $0x90] sm:$0xff]
  %v815 = vmul.f32 %v814, %v802
  %816 = vset.pattern.permute.xlu0 18
  %817 = vperm.xlu0 %816, %v520
  %v818 = vpop.permute.xlu0 %817
  %v820 = vperm.slane %v762, 2
  %v821 = vmul.f32 %v818, %v820
  %v822 = vadd.f32 %v815, %v821
  %823 = vst.msk [vmem:[#allocation3 + $0x10] sm:$0xff] %vm385, %v813
  %824 = vst.msk [vmem:[#allocation3 + $0x90] sm:$0xff] %vm385, %v822
  %v825 = vld [vmem:[#allocation2 + $0x18] sm:$0xff]
  %v826 = vmul.f32 %v825, %v813
  %827 = vset.pattern.permute.xlu0 3
  %828 = vperm.xlu0 %827, %v520
  %v829 = vpop.permute.xlu0 %828
  %v831 = vperm.slane %v760, 3
  %v832 = vmul.f32 %v829, %v831
  %v833 = vadd.f32 %v826, %v832
  %v834 = vld [vmem:[#allocation2 + $0x98] sm:$0xff]
  %v835 = vmul.f32 %v834, %v822
  %836 = vset.pattern.permute.xlu0 19
  %837 = vperm.xlu0 %836, %v520
  %v838 = vpop.permute.xlu0 %837
  %v840 = vperm.slane %v762, 3
  %v841 = vmul.f32 %v838, %v840
  %v842 = vadd.f32 %v835, %v841
  %843 = vst.msk [vmem:[#allocation3 + $0x18] sm:$0xff] %vm385, %v833
  %844 = vst.msk [vmem:[#allocation3 + $0x98] sm:$0xff] %vm385, %v842
  %v845 = vld [vmem:[#allocation2 + $0x20] sm:$0xff]
  %v846 = vmul.f32 %v845, %v833
  %847 = vset.pattern.permute.xlu0 4
  %848 = vperm.xlu0 %847, %v520
  %v849 = vpop.permute.xlu0 %848
  %v851 = vperm.slane %v760, 4
  %v852 = vmul.f32 %v849, %v851
  %v853 = vadd.f32 %v846, %v852
  %v854 = vld [vmem:[#allocation2 + $0xa0] sm:$0xff]
  %v855 = vmul.f32 %v854, %v842
  %856 = vset.pattern.permute.xlu0 20
  %857 = vperm.xlu0 %856, %v520
  %v858 = vpop.permute.xlu0 %857
  %v860 = vperm.slane %v762, 4
  %v861 = vmul.f32 %v858, %v860
  %v862 = vadd.f32 %v855, %v861
  %863 = vst.msk [vmem:[#allocation3 + $0x20] sm:$0xff] %vm385, %v853
  %864 = vst.msk [vmem:[#allocation3 + $0xa0] sm:$0xff] %vm385, %v862
  %v865 = vld [vmem:[#allocation2 + $0x28] sm:$0xff]
  %v866 = vmul.f32 %v865, %v853
  %867 = vset.pattern.permute.xlu0 5
  %868 = vperm.xlu0 %867, %v520
  %v869 = vpop.permute.xlu0 %868
  %v871 = vperm.slane %v760, 5
  %v872 = vmul.f32 %v869, %v871
  %v873 = vadd.f32 %v866, %v872
  %v874 = vld [vmem:[#allocation2 + $0xa8] sm:$0xff]
  %v875 = vmul.f32 %v874, %v862
  %876 = vset.pattern.permute.xlu0 21
  %877 = vperm.xlu0 %876, %v520
  %v878 = vpop.permute.xlu0 %877
  %v880 = vperm.slane %v762, 5
  %v881 = vmul.f32 %v878, %v880
  %v882 = vadd.f32 %v875, %v881
  %883 = vst.msk [vmem:[#allocation3 + $0x28] sm:$0xff] %vm385, %v873
  %884 = vst.msk [vmem:[#allocation3 + $0xa8] sm:$0xff] %vm385, %v882
  %v885 = vld [vmem:[#allocation2 + $0x30] sm:$0xff]
  %v886 = vmul.f32 %v885, %v873
  %887 = vset.pattern.permute.xlu0 6
  %888 = vperm.xlu0 %887, %v520
  %v889 = vpop.permute.xlu0 %888
  %v891 = vperm.slane %v760, 6
  %v892 = vmul.f32 %v889, %v891
  %v893 = vadd.f32 %v886, %v892
  %v894 = vld [vmem:[#allocation2 + $0xb0] sm:$0xff]
  %v895 = vmul.f32 %v894, %v882
  %896 = vset.pattern.permute.xlu0 22
  %897 = vperm.xlu0 %896, %v520
  %v898 = vpop.permute.xlu0 %897
  %v900 = vperm.slane %v762, 6
  %v901 = vmul.f32 %v898, %v900
  %v902 = vadd.f32 %v895, %v901
  %903 = vst.msk [vmem:[#allocation3 + $0x30] sm:$0xff] %vm385, %v893
  %904 = vst.msk [vmem:[#allocation3 + $0xb0] sm:$0xff] %vm385, %v902
  %v905 = vld [vmem:[#allocation2 + $0x38] sm:$0xff]
  %v906 = vmul.f32 %v905, %v893
  %907 = vset.pattern.permute.xlu0 7
  %908 = vperm.xlu0 %907, %v520
  %v909 = vpop.permute.xlu0 %908
  %v911 = vperm.slane %v760, 7
  %v912 = vmul.f32 %v909, %v911
  %v913 = vadd.f32 %v906, %v912
  %v914 = vld [vmem:[#allocation2 + $0xb8] sm:$0xff]
  %v915 = vmul.f32 %v914, %v902
  %916 = vset.pattern.permute.xlu0 23
  %917 = vperm.xlu0 %916, %v520
  %v918 = vpop.permute.xlu0 %917
  %v920 = vperm.slane %v762, 7
  %v921 = vmul.f32 %v918, %v920
  %v922 = vadd.f32 %v915, %v921
  %923 = vst.msk [vmem:[#allocation3 + $0x38] sm:$0xff] %vm385, %v913
  %924 = vst.msk [vmem:[#allocation3 + $0xb8] sm:$0xff] %vm385, %v922
  %v925 = vld [vmem:[#allocation2 + $0x40] sm:$0xff]
  %v926 = vmul.f32 %v925, %v913
  %927 = vset.pattern.permute.xlu0 8
  %928 = vperm.xlu0 %927, %v520
  %v929 = vpop.permute.xlu0 %928
  %v931 = vperm.slane %v761, 0
  %v932 = vmul.f32 %v929, %v931
  %v933 = vadd.f32 %v926, %v932
  %v934 = vld [vmem:[#allocation2 + $0xc0] sm:$0xff]
  %v935 = vmul.f32 %v934, %v922
  %936 = vset.pattern.permute.xlu0 24
  %937 = vperm.xlu0 %936, %v520
  %v938 = vpop.permute.xlu0 %937
  %v940 = vperm.slane %v763, 0
  %v941 = vmul.f32 %v938, %v940
  %v942 = vadd.f32 %v935, %v941
  %943 = vst.msk [vmem:[#allocation3 + $0x40] sm:$0xff] %vm385, %v933
  %944 = vst.msk [vmem:[#allocation3 + $0xc0] sm:$0xff] %vm385, %v942
  %v945 = vld [vmem:[#allocation2 + $0x48] sm:$0xff]
  %v946 = vmul.f32 %v945, %v933
  %947 = vset.pattern.permute.xlu0 9
  %948 = vperm.xlu0 %947, %v520
  %v949 = vpop.permute.xlu0 %948
  %v951 = vperm.slane %v761, 1
  %v952 = vmul.f32 %v949, %v951
  %v953 = vadd.f32 %v946, %v952
  %v954 = vld [vmem:[#allocation2 + $0xc8] sm:$0xff]
  %v955 = vmul.f32 %v954, %v942
  %956 = vset.pattern.permute.xlu0 25
  %957 = vperm.xlu0 %956, %v520
  %v958 = vpop.permute.xlu0 %957
  %v960 = vperm.slane %v763, 1
  %v961 = vmul.f32 %v958, %v960
  %v962 = vadd.f32 %v955, %v961
  %963 = vst.msk [vmem:[#allocation3 + $0x48] sm:$0xff] %vm385, %v953
  %964 = vst.msk [vmem:[#allocation3 + $0xc8] sm:$0xff] %vm385, %v962
  %v965 = vld [vmem:[#allocation2 + $0x50] sm:$0xff]
  %v966 = vmul.f32 %v965, %v953
  %967 = vset.pattern.permute.xlu0 10
  %968 = vperm.xlu0 %967, %v520
  %v969 = vpop.permute.xlu0 %968
  %v971 = vperm.slane %v761, 2
  %v972 = vmul.f32 %v969, %v971
  %v973 = vadd.f32 %v966, %v972
  %v974 = vld [vmem:[#allocation2 + $0xd0] sm:$0xff]
  %v975 = vmul.f32 %v974, %v962
  %976 = vset.pattern.permute.xlu0 26
  %977 = vperm.xlu0 %976, %v520
  %v978 = vpop.permute.xlu0 %977
  %v980 = vperm.slane %v763, 2
  %v981 = vmul.f32 %v978, %v980
  %v982 = vadd.f32 %v975, %v981
  %983 = vst.msk [vmem:[#allocation3 + $0x50] sm:$0xff] %vm385, %v973
  %984 = vst.msk [vmem:[#allocation3 + $0xd0] sm:$0xff] %vm385, %v982
  %v985 = vld [vmem:[#allocation2 + $0x58] sm:$0xff]
  %v986 = vmul.f32 %v985, %v973
  %987 = vset.pattern.permute.xlu0 11
  %988 = vperm.xlu0 %987, %v520
  %v989 = vpop.permute.xlu0 %988
  %v991 = vperm.slane %v761, 3
  %v992 = vmul.f32 %v989, %v991
  %v993 = vadd.f32 %v986, %v992
  %v994 = vld [vmem:[#allocation2 + $0xd8] sm:$0xff]
  %v995 = vmul.f32 %v994, %v982
  %996 = vset.pattern.permute.xlu0 27
  %997 = vperm.xlu0 %996, %v520
  %v998 = vpop.permute.xlu0 %997
  %v1000 = vperm.slane %v763, 3
  %v1001 = vmul.f32 %v998, %v1000
  %v1002 = vadd.f32 %v995, %v1001
  %1003 = vst.msk [vmem:[#allocation3 + $0x58] sm:$0xff] %vm385, %v993
  %1004 = vst.msk [vmem:[#allocation3 + $0xd8] sm:$0xff] %vm385, %v1002
  %v1005 = vld [vmem:[#allocation2 + $0x60] sm:$0xff]
  %v1006 = vmul.f32 %v1005, %v993
  %1007 = vset.pattern.permute.xlu0 12
  %1008 = vperm.xlu0 %1007, %v520
  %v1009 = vpop.permute.xlu0 %1008
  %v1011 = vperm.slane %v761, 4
  %v1012 = vmul.f32 %v1009, %v1011
  %v1013 = vadd.f32 %v1006, %v1012
  %v1014 = vld [vmem:[#allocation2 + $0xe0] sm:$0xff]
  %v1015 = vmul.f32 %v1014, %v1002
  %1016 = vset.pattern.permute.xlu0 28
  %1017 = vperm.xlu0 %1016, %v520
  %v1018 = vpop.permute.xlu0 %1017
  %v1020 = vperm.slane %v763, 4
  %v1021 = vmul.f32 %v1018, %v1020
  %v1022 = vadd.f32 %v1015, %v1021
  %1023 = vst.msk [vmem:[#allocation3 + $0x60] sm:$0xff] %vm385, %v1013
  %1024 = vst.msk [vmem:[#allocation3 + $0xe0] sm:$0xff] %vm385, %v1022
  %v1025 = vld [vmem:[#allocation2 + $0x68] sm:$0xff]
  %v1026 = vmul.f32 %v1025, %v1013
  %1027 = vset.pattern.permute.xlu0 13
  %1028 = vperm.xlu0 %1027, %v520
  %v1029 = vpop.permute.xlu0 %1028
  %v1031 = vperm.slane %v761, 5
  %v1032 = vmul.f32 %v1029, %v1031
  %v1033 = vadd.f32 %v1026, %v1032
  %v1034 = vld [vmem:[#allocation2 + $0xe8] sm:$0xff]
  %v1035 = vmul.f32 %v1034, %v1022
  %1036 = vset.pattern.permute.xlu0 29
  %1037 = vperm.xlu0 %1036, %v520
  %v1038 = vpop.permute.xlu0 %1037
  %v1040 = vperm.slane %v763, 5
  %v1041 = vmul.f32 %v1038, %v1040
  %v1042 = vadd.f32 %v1035, %v1041
  %1043 = vst.msk [vmem:[#allocation3 + $0x68] sm:$0xff] %vm385, %v1033
  %1044 = vst.msk [vmem:[#allocation3 + $0xe8] sm:$0xff] %vm385, %v1042
  %v1045 = vld [vmem:[#allocation2 + $0x70] sm:$0xff]
  %v1046 = vmul.f32 %v1045, %v1033
  %1047 = vset.pattern.permute.xlu0 14
  %1048 = vperm.xlu0 %1047, %v520
  %v1049 = vpop.permute.xlu0 %1048
  %v1051 = vperm.slane %v761, 6
  %v1052 = vmul.f32 %v1049, %v1051
  %v1053 = vadd.f32 %v1046, %v1052
  %v1054 = vld [vmem:[#allocation2 + $0xf0] sm:$0xff]
  %v1055 = vmul.f32 %v1054, %v1042
  %1056 = vset.pattern.permute.xlu0 30
  %1057 = vperm.xlu0 %1056, %v520
  %v1058 = vpop.permute.xlu0 %1057
  %v1060 = vperm.slane %v763, 6
  %v1061 = vmul.f32 %v1058, %v1060
  %v1062 = vadd.f32 %v1055, %v1061
  %1063 = vst.msk [vmem:[#allocation3 + $0x70] sm:$0xff] %vm385, %v1053
  %1064 = vst.msk [vmem:[#allocation3 + $0xf0] sm:$0xff] %vm385, %v1062
  %v1065 = vld [vmem:[#allocation2 + $0x78] sm:$0xff]
  %v1066 = vmul.f32 %v1065, %v1053
  %1067 = vset.pattern.permute.xlu0 15
  %1068 = vperm.xlu0 %1067, %v520
  %v1069 = vpop.permute.xlu0 %1068
  %v1071 = vperm.slane %v761, 7
  %v1072 = vmul.f32 %v1069, %v1071
  %v1073 = vadd.f32 %v1066, %v1072
  %v1074 = vld [vmem:[#allocation2 + $0xf8] sm:$0xff]
  %v1075 = vmul.f32 %v1074, %v1062
  %1076 = vset.pattern.permute.xlu0 31
  %1077 = vperm.xlu0 %1076, %v520
  %v1078 = vpop.permute.xlu0 %1077
  %v1080 = vperm.slane %v763, 7
  %v1081 = vmul.f32 %v1078, %v1080
  %v1082 = vadd.f32 %v1075, %v1081
  %1083 = vst.msk [vmem:[#allocation3 + $0x78] sm:$0xff] %vm385, %v1073
  %1084 = vst.msk [vmem:[#allocation3 + $0xf8] sm:$0xff] %vm385, %v1082
  %v1085 = vld [vmem:[#allocation3] ss:$8 sm:$0xf]
  %v1086 = vld [vmem:[#allocation3] ss:$8 sm:$0xf0]
  %v1087 = vor.u32 %v1085, %v1086
  %s1088 = scalar_lea.vmem [#allocation3], 64
  %v1089 = vld [vmem:[%s1088] ss:$8 sm:$0xf]
  %v1090 = vld [vmem:[%s1088] ss:$8 sm:$0xf0]
  %v1091 = vor.u32 %v1089, %v1090
  %s1092 = scalar_lea.vmem [#allocation3], 128
  %v1093 = vld [vmem:[%s1092] ss:$8 sm:$0xf]
  %v1094 = vld [vmem:[%s1092] ss:$8 sm:$0xf0]
  %v1095 = vor.u32 %v1093, %v1094
  %s1096 = scalar_lea.vmem [#allocation3], 192
  %v1097 = vld [vmem:[%s1096] ss:$8 sm:$0xf]
  %v1098 = vld [vmem:[%s1096] ss:$8 sm:$0xf0]
  %v1099 = vor.u32 %v1097, %v1098
  %1100 = vset.pattern.permute.xlu0 72
  %1101 = vperm.xlu0 %1100, %v402
  %v1102 = vpop.permute.xlu0 %1101
  %1104 = vset.pattern.permute.xlu0 72
  %1105 = vperm.xlu0 %1104, %v404
  %v1106 = vpop.permute.xlu0 %1105
  %1108 = vset.pattern.permute.xlu0 72
  %1109 = vperm.xlu0 %1108, %v407
  %v1110 = vpop.permute.xlu0 %1109
  %1112 = vset.pattern.permute.xlu0 72
  %1113 = vperm.xlu0 %1112, %v409
  %v1114 = vpop.permute.xlu0 %1113
  %v1116 = vmul.f32 %v1102, %v1087
  %v1117 = vmul.f32 %v1106, %v1091
  %v1118 = vmul.f32 %v1110, %v1095
  %v1119 = vmul.f32 %v1114, %v1099
  %s1120 = scalar_lea.vmem [#allocation3], 1
  %v1121 = vld [vmem:[%s1120] ss:$8 sm:$0xf]
  %v1122 = vld [vmem:[%s1120] ss:$8 sm:$0xf0]
  %v1123 = vor.u32 %v1121, %v1122
  %s1124 = scalar_lea.vmem [#allocation3], 65
  %v1125 = vld [vmem:[%s1124] ss:$8 sm:$0xf]
  %v1126 = vld [vmem:[%s1124] ss:$8 sm:$0xf0]
  %v1127 = vor.u32 %v1125, %v1126
  %s1128 = scalar_lea.vmem [#allocation3], 129
  %v1129 = vld [vmem:[%s1128] ss:$8 sm:$0xf]
  %v1130 = vld [vmem:[%s1128] ss:$8 sm:$0xf0]
  %v1131 = vor.u32 %v1129, %v1130
  %s1132 = scalar_lea.vmem [#allocation3], 193
  %v1133 = vld [vmem:[%s1132] ss:$8 sm:$0xf]
  %v1134 = vld [vmem:[%s1132] ss:$8 sm:$0xf0]
  %v1135 = vor.u32 %v1133, %v1134
  %1136 = vset.pattern.permute.xlu0 73
  %1137 = vperm.xlu0 %1136, %v402
  %v1138 = vpop.permute.xlu0 %1137
  %1140 = vset.pattern.permute.xlu0 73
  %1141 = vperm.xlu0 %1140, %v404
  %v1142 = vpop.permute.xlu0 %1141
  %1144 = vset.pattern.permute.xlu0 73
  %1145 = vperm.xlu0 %1144, %v407
  %v1146 = vpop.permute.xlu0 %1145
  %1148 = vset.pattern.permute.xlu0 73
  %1149 = vperm.xlu0 %1148, %v409
  %v1150 = vpop.permute.xlu0 %1149
  %v1152 = vmul.f32 %v1138, %v1123
  %v1153 = vmul.f32 %v1142, %v1127
  %v1154 = vmul.f32 %v1146, %v1131
  %v1155 = vmul.f32 %v1150, %v1135
  %v1156 = vadd.f32 %v1116, %v1152
  %v1157 = vadd.f32 %v1117, %v1153
  %v1158 = vadd.f32 %v1118, %v1154
  %v1159 = vadd.f32 %v1119, %v1155
  %s1160 = scalar_lea.vmem [#allocation3], 2
  %v1161 = vld [vmem:[%s1160] ss:$8 sm:$0xf]
  %v1162 = vld [vmem:[%s1160] ss:$8 sm:$0xf0]
  %v1163 = vor.u32 %v1161, %v1162
  %s1164 = scalar_lea.vmem [#allocation3], 66
  %v1165 = vld [vmem:[%s1164] ss:$8 sm:$0xf]
  %v1166 = vld [vmem:[%s1164] ss:$8 sm:$0xf0]
  %v1167 = vor.u32 %v1165, %v1166
  %s1168 = scalar_lea.vmem [#allocation3], 130
  %v1169 = vld [vmem:[%s1168] ss:$8 sm:$0xf]
  %v1170 = vld [vmem:[%s1168] ss:$8 sm:$0xf0]
  %v1171 = vor.u32 %v1169, %v1170
  %s1172 = scalar_lea.vmem [#allocation3], 194
  %v1173 = vld [vmem:[%s1172] ss:$8 sm:$0xf]
  %v1174 = vld [vmem:[%s1172] ss:$8 sm:$0xf0]
  %v1175 = vor.u32 %v1173, %v1174
  %1176 = vset.pattern.permute.xlu0 74
  %1177 = vperm.xlu0 %1176, %v402
  %v1178 = vpop.permute.xlu0 %1177
  %1180 = vset.pattern.permute.xlu0 74
  %1181 = vperm.xlu0 %1180, %v404
  %v1182 = vpop.permute.xlu0 %1181
  %1184 = vset.pattern.permute.xlu0 74
  %1185 = vperm.xlu0 %1184, %v407
  %v1186 = vpop.permute.xlu0 %1185
  %1188 = vset.pattern.permute.xlu0 74
  %1189 = vperm.xlu0 %1188, %v409
  %v1190 = vpop.permute.xlu0 %1189
  %v1192 = vmul.f32 %v1178, %v1163
  %v1193 = vmul.f32 %v1182, %v1167
  %v1194 = vmul.f32 %v1186, %v1171
  %v1195 = vmul.f32 %v1190, %v1175
  %v1196 = vadd.f32 %v1156, %v1192
  %v1197 = vadd.f32 %v1157, %v1193
  %v1198 = vadd.f32 %v1158, %v1194
  %v1199 = vadd.f32 %v1159, %v1195
  %s1200 = scalar_lea.vmem [#allocation3], 3
  %v1201 = vld [vmem:[%s1200] ss:$8 sm:$0xf]
  %v1202 = vld [vmem:[%s1200] ss:$8 sm:$0xf0]
  %v1203 = vor.u32 %v1201, %v1202
  %s1204 = scalar_lea.vmem [#allocation3], 67
  %v1205 = vld [vmem:[%s1204] ss:$8 sm:$0xf]
  %v1206 = vld [vmem:[%s1204] ss:$8 sm:$0xf0]
  %v1207 = vor.u32 %v1205, %v1206
  %s1208 = scalar_lea.vmem [#allocation3], 131
  %v1209 = vld [vmem:[%s1208] ss:$8 sm:$0xf]
  %v1210 = vld [vmem:[%s1208] ss:$8 sm:$0xf0]
  %v1211 = vor.u32 %v1209, %v1210
  %s1212 = scalar_lea.vmem [#allocation3], 195
  %v1213 = vld [vmem:[%s1212] ss:$8 sm:$0xf]
  %v1214 = vld [vmem:[%s1212] ss:$8 sm:$0xf0]
  %v1215 = vor.u32 %v1213, %v1214
  %1216 = vset.pattern.permute.xlu0 75
  %1217 = vperm.xlu0 %1216, %v402
  %v1218 = vpop.permute.xlu0 %1217
  %1220 = vset.pattern.permute.xlu0 75
  %1221 = vperm.xlu0 %1220, %v404
  %v1222 = vpop.permute.xlu0 %1221
  %1224 = vset.pattern.permute.xlu0 75
  %1225 = vperm.xlu0 %1224, %v407
  %v1226 = vpop.permute.xlu0 %1225
  %1228 = vset.pattern.permute.xlu0 75
  %1229 = vperm.xlu0 %1228, %v409
  %v1230 = vpop.permute.xlu0 %1229
  %v1232 = vmul.f32 %v1218, %v1203
  %v1233 = vmul.f32 %v1222, %v1207
  %v1234 = vmul.f32 %v1226, %v1211
  %v1235 = vmul.f32 %v1230, %v1215
  %v1236 = vadd.f32 %v1196, %v1232
  %v1237 = vadd.f32 %v1197, %v1233
  %v1238 = vadd.f32 %v1198, %v1234
  %v1239 = vadd.f32 %v1199, %v1235
  %s1240 = scalar_lea.vmem [#allocation3], 4
  %v1241 = vld [vmem:[%s1240] ss:$8 sm:$0xf]
  %v1242 = vld [vmem:[%s1240] ss:$8 sm:$0xf0]
  %v1243 = vor.u32 %v1241, %v1242
  %s1244 = scalar_lea.vmem [#allocation3], 68
  %v1245 = vld [vmem:[%s1244] ss:$8 sm:$0xf]
  %v1246 = vld [vmem:[%s1244] ss:$8 sm:$0xf0]
  %v1247 = vor.u32 %v1245, %v1246
  %s1248 = scalar_lea.vmem [#allocation3], 132
  %v1249 = vld [vmem:[%s1248] ss:$8 sm:$0xf]
  %v1250 = vld [vmem:[%s1248] ss:$8 sm:$0xf0]
  %v1251 = vor.u32 %v1249, %v1250
  %s1252 = scalar_lea.vmem [#allocation3], 196
  %v1253 = vld [vmem:[%s1252] ss:$8 sm:$0xf]
  %v1254 = vld [vmem:[%s1252] ss:$8 sm:$0xf0]
  %v1255 = vor.u32 %v1253, %v1254
  %1256 = vset.pattern.permute.xlu0 76
  %1257 = vperm.xlu0 %1256, %v402
  %v1258 = vpop.permute.xlu0 %1257
  %1260 = vset.pattern.permute.xlu0 76
  %1261 = vperm.xlu0 %1260, %v404
  %v1262 = vpop.permute.xlu0 %1261
  %1264 = vset.pattern.permute.xlu0 76
  %1265 = vperm.xlu0 %1264, %v407
  %v1266 = vpop.permute.xlu0 %1265
  %1268 = vset.pattern.permute.xlu0 76
  %1269 = vperm.xlu0 %1268, %v409
  %v1270 = vpop.permute.xlu0 %1269
  %v1272 = vmul.f32 %v1258, %v1243
  %v1273 = vmul.f32 %v1262, %v1247
  %v1274 = vmul.f32 %v1266, %v1251
  %v1275 = vmul.f32 %v1270, %v1255
  %v1276 = vadd.f32 %v1236, %v1272
  %v1277 = vadd.f32 %v1237, %v1273
  %v1278 = vadd.f32 %v1238, %v1274
  %v1279 = vadd.f32 %v1239, %v1275
  %s1280 = scalar_lea.vmem [#allocation3], 5
  %v1281 = vld [vmem:[%s1280] ss:$8 sm:$0xf]
  %v1282 = vld [vmem:[%s1280] ss:$8 sm:$0xf0]
  %v1283 = vor.u32 %v1281, %v1282
  %s1284 = scalar_lea.vmem [#allocation3], 69
  %v1285 = vld [vmem:[%s1284] ss:$8 sm:$0xf]
  %v1286 = vld [vmem:[%s1284] ss:$8 sm:$0xf0]
  %v1287 = vor.u32 %v1285, %v1286
  %s1288 = scalar_lea.vmem [#allocation3], 133
  %v1289 = vld [vmem:[%s1288] ss:$8 sm:$0xf]
  %v1290 = vld [vmem:[%s1288] ss:$8 sm:$0xf0]
  %v1291 = vor.u32 %v1289, %v1290
  %s1292 = scalar_lea.vmem [#allocation3], 197
  %v1293 = vld [vmem:[%s1292] ss:$8 sm:$0xf]
  %v1294 = vld [vmem:[%s1292] ss:$8 sm:$0xf0]
  %v1295 = vor.u32 %v1293, %v1294
  %1296 = vset.pattern.permute.xlu0 77
  %1297 = vperm.xlu0 %1296, %v402
  %v1298 = vpop.permute.xlu0 %1297
  %1300 = vset.pattern.permute.xlu0 77
  %1301 = vperm.xlu0 %1300, %v404
  %v1302 = vpop.permute.xlu0 %1301
  %1304 = vset.pattern.permute.xlu0 77
  %1305 = vperm.xlu0 %1304, %v407
  %v1306 = vpop.permute.xlu0 %1305
  %1308 = vset.pattern.permute.xlu0 77
  %1309 = vperm.xlu0 %1308, %v409
  %v1310 = vpop.permute.xlu0 %1309
  %v1312 = vmul.f32 %v1298, %v1283
  %v1313 = vmul.f32 %v1302, %v1287
  %v1314 = vmul.f32 %v1306, %v1291
  %v1315 = vmul.f32 %v1310, %v1295
  %v1316 = vadd.f32 %v1276, %v1312
  %v1317 = vadd.f32 %v1277, %v1313
  %v1318 = vadd.f32 %v1278, %v1314
  %v1319 = vadd.f32 %v1279, %v1315
  %s1320 = scalar_lea.vmem [#allocation3], 6
  %v1321 = vld [vmem:[%s1320] ss:$8 sm:$0xf]
  %v1322 = vld [vmem:[%s1320] ss:$8 sm:$0xf0]
  %v1323 = vor.u32 %v1321, %v1322
  %s1324 = scalar_lea.vmem [#allocation3], 70
  %v1325 = vld [vmem:[%s1324] ss:$8 sm:$0xf]
  %v1326 = vld [vmem:[%s1324] ss:$8 sm:$0xf0]
  %v1327 = vor.u32 %v1325, %v1326
  %s1328 = scalar_lea.vmem [#allocation3], 134
  %v1329 = vld [vmem:[%s1328] ss:$8 sm:$0xf]
  %v1330 = vld [vmem:[%s1328] ss:$8 sm:$0xf0]
  %v1331 = vor.u32 %v1329, %v1330
  %s1332 = scalar_lea.vmem [#allocation3], 198
  %v1333 = vld [vmem:[%s1332] ss:$8 sm:$0xf]
  %v1334 = vld [vmem:[%s1332] ss:$8 sm:$0xf0]
  %v1335 = vor.u32 %v1333, %v1334
  %1336 = vset.pattern.permute.xlu0 78
  %1337 = vperm.xlu0 %1336, %v402
  %v1338 = vpop.permute.xlu0 %1337
  %1340 = vset.pattern.permute.xlu0 78
  %1341 = vperm.xlu0 %1340, %v404
  %v1342 = vpop.permute.xlu0 %1341
  %1344 = vset.pattern.permute.xlu0 78
  %1345 = vperm.xlu0 %1344, %v407
  %v1346 = vpop.permute.xlu0 %1345
  %1348 = vset.pattern.permute.xlu0 78
  %1349 = vperm.xlu0 %1348, %v409
  %v1350 = vpop.permute.xlu0 %1349
  %v1352 = vmul.f32 %v1338, %v1323
  %v1353 = vmul.f32 %v1342, %v1327
  %v1354 = vmul.f32 %v1346, %v1331
  %v1355 = vmul.f32 %v1350, %v1335
  %v1356 = vadd.f32 %v1316, %v1352
  %v1357 = vadd.f32 %v1317, %v1353
  %v1358 = vadd.f32 %v1318, %v1354
  %v1359 = vadd.f32 %v1319, %v1355
  %s1360 = scalar_lea.vmem [#allocation3], 7
  %v1361 = vld [vmem:[%s1360] ss:$8 sm:$0xf]
  %v1362 = vld [vmem:[%s1360] ss:$8 sm:$0xf0]
  %v1363 = vor.u32 %v1361, %v1362
  %s1364 = scalar_lea.vmem [#allocation3], 71
  %v1365 = vld [vmem:[%s1364] ss:$8 sm:$0xf]
  %v1366 = vld [vmem:[%s1364] ss:$8 sm:$0xf0]
  %v1367 = vor.u32 %v1365, %v1366
  %s1368 = scalar_lea.vmem [#allocation3], 135
  %v1369 = vld [vmem:[%s1368] ss:$8 sm:$0xf]
  %v1370 = vld [vmem:[%s1368] ss:$8 sm:$0xf0]
  %v1371 = vor.u32 %v1369, %v1370
  %s1372 = scalar_lea.vmem [#allocation3], 199
  %v1373 = vld [vmem:[%s1372] ss:$8 sm:$0xf]
  %v1374 = vld [vmem:[%s1372] ss:$8 sm:$0xf0]
  %v1375 = vor.u32 %v1373, %v1374
  %1376 = vset.pattern.permute.xlu0 79
  %1377 = vperm.xlu0 %1376, %v402
  %v1378 = vpop.permute.xlu0 %1377
  %1380 = vset.pattern.permute.xlu0 79
  %1381 = vperm.xlu0 %1380, %v404
  %v1382 = vpop.permute.xlu0 %1381
  %1384 = vset.pattern.permute.xlu0 79
  %1385 = vperm.xlu0 %1384, %v407
  %v1386 = vpop.permute.xlu0 %1385
  %1388 = vset.pattern.permute.xlu0 79
  %1389 = vperm.xlu0 %1388, %v409
  %v1390 = vpop.permute.xlu0 %1389
  %v1392 = vmul.f32 %v1378, %v1363
  %v1393 = vmul.f32 %v1382, %v1367
  %v1394 = vmul.f32 %v1386, %v1371
  %v1395 = vmul.f32 %v1390, %v1375
  %v1396 = vadd.f32 %v1356, %v1392
  %v1397 = vadd.f32 %v1357, %v1393
  %v1398 = vadd.f32 %v1358, %v1394
  %v1399 = vadd.f32 %v1359, %v1395
  %v1400 = vperm.slane %v15, 4
  %v1401 = vmul.f32 %v1400, %v347
  %v1402 = vmul.f32 %v1400, %v348
  %v1403 = vmul.f32 %v1400, %v349
  %v1404 = vmul.f32 %v1400, %v350
  %v1405 = vadd.f32 %v1396, %v1401
  %v1406 = vadd.f32 %v1397, %v1402
  %v1407 = vadd.f32 %v1398, %v1403
  %v1408 = vadd.f32 %v1399, %v1404
  %v1409 = vxor.u32 %v158, 2147483648
  %v1410 = vxor.u32 %v160, 2147483648
  %v1411 = vxor.u32 %v163, 2147483648
  %v1412 = vxor.u32 %v165, 2147483648
  %v1413 = vmul.f32 %v1409, 1.442695
  %v1414 = vpow.pop %v1413
  %v1415 = vmul.f32 %v1410, 1.442695
  %v1416 = vpow.pop %v1415
  %v1417 = vmul.f32 %v1411, 1.442695
  %v1418 = vpow.pop %v1417
  %v1419 = vmul.f32 %v1412, 1.442695
  %v1420 = vpow.pop %v1419
  %v1421 = vadd.f32 %v1414, 1.0
  %v1422 = vadd.f32 %v1416, 1.0
  %v1423 = vadd.f32 %v1418, 1.0
  %v1424 = vadd.f32 %v1420, 1.0
  %v1425 = vrcp.pop %v1421
  %v1426 = vmul.f32 %v1421, %v1425
  %v1427 = vsub.f32 1.0, %v1426
  %v1428 = vmul.f32 %v1425, %v1427
  %v1429 = vadd.f32 %v1425, %v1428
  %vm1430 = vweird.f32 %v1421
  %vm1431 = vweird.f32 %v1425
  %vm1432 = vmor %vm1430, %vm1431
  %v1433 = vsel %vm1432, %v1425, %v1429
  %v1434 = vand.u32 2147483647, %v1421
  %vm1435 = vcmp.eq.f32.partialorder %v1434, 8.507059e+37
  %v1436 = vand.u32 %v1421, 2147483648
  %v1437 = vor.u32 1.1754944e-38, %v1436
  %v1438 = vsel %vm1435, %v1437, %v1433
  %v1439 = vmul.f32 1.0, %v1438
  %v1440 = vrcp.pop %v1422
  %v1441 = vmul.f32 %v1422, %v1440
  %v1442 = vsub.f32 1.0, %v1441
  %v1443 = vmul.f32 %v1440, %v1442
  %v1444 = vadd.f32 %v1440, %v1443
  %vm1445 = vweird.f32 %v1422
  %vm1446 = vweird.f32 %v1440
  %vm1447 = vmor %vm1445, %vm1446
  %v1448 = vsel %vm1447, %v1440, %v1444
  %v1449 = vand.u32 2147483647, %v1422
  %vm1450 = vcmp.eq.f32.partialorder %v1449, 8.507059e+37
  %v1451 = vand.u32 %v1422, 2147483648
  %v1452 = vor.u32 1.1754944e-38, %v1451
  %v1453 = vsel %vm1450, %v1452, %v1448
  %v1454 = vmul.f32 1.0, %v1453
  %v1455 = vrcp.pop %v1423
  %v1456 = vmul.f32 %v1423, %v1455
  %v1457 = vsub.f32 1.0, %v1456
  %v1458 = vmul.f32 %v1455, %v1457
  %v1459 = vadd.f32 %v1455, %v1458
  %vm1460 = vweird.f32 %v1423
  %vm1461 = vweird.f32 %v1455
  %vm1462 = vmor %vm1460, %vm1461
  %v1463 = vsel %vm1462, %v1455, %v1459
  %v1464 = vand.u32 2147483647, %v1423
  %vm1465 = vcmp.eq.f32.partialorder %v1464, 8.507059e+37
  %v1466 = vand.u32 %v1423, 2147483648
  %v1467 = vor.u32 1.1754944e-38, %v1466
  %v1468 = vsel %vm1465, %v1467, %v1463
  %v1469 = vmul.f32 1.0, %v1468
  %v1470 = vrcp.pop %v1424
  %v1471 = vmul.f32 %v1424, %v1470
  %v1472 = vsub.f32 1.0, %v1471
  %v1473 = vmul.f32 %v1470, %v1472
  %v1474 = vadd.f32 %v1470, %v1473
  %vm1475 = vweird.f32 %v1424
  %vm1476 = vweird.f32 %v1470
  %vm1477 = vmor %vm1475, %vm1476
  %v1478 = vsel %vm1477, %v1470, %v1474
  %v1479 = vand.u32 2147483647, %v1424
  %vm1480 = vcmp.eq.f32.partialorder %v1479, 8.507059e+37
  %v1481 = vand.u32 %v1424, 2147483648
  %v1482 = vor.u32 1.1754944e-38, %v1481
  %v1483 = vsel %vm1480, %v1482, %v1478
  %v1484 = vmul.f32 1.0, %v1483
  %v1485 = vmul.f32 %v158, %v1439
  %v1486 = vmul.f32 %v160, %v1454
  %v1487 = vmul.f32 %v163, %v1469
  %v1488 = vmul.f32 %v165, %v1484
  %1493 = vrot.lane.b32.xlu0 %v1485, 64
  %v1494 = vpop.permute.xlu0 %1493
  %1495 = vrot.lane.b32.xlu0 %v1486, 64
  %v1496 = vpop.permute.xlu0 %1495
  %1497 = vrot.lane.b32.xlu0 %v1487, 64
  %v1498 = vpop.permute.xlu0 %1497
  %1499 = vrot.lane.b32.xlu0 %v1488, 64
  %v1500 = vpop.permute.xlu0 %1499
  %v1505 = vmul.f32 %v1405, %v1494
  %v1506 = vmul.f32 %v1406, %v1496
  %v1507 = vmul.f32 %v1407, %v1498
  %v1508 = vmul.f32 %v1408, %v1500
  %1513 = vrot.lane.b32.xlu0 %v23, 64
  %v1514 = vpop.permute.xlu0 %1513
  %1515 = vrot.lane.b32.xlu0 %v24, 64
  %v1516 = vpop.permute.xlu0 %1515
  %1517 = vrot.lane.b32.xlu0 %v25, 64
  %v1518 = vpop.permute.xlu0 %1517
  %1519 = vrot.lane.b32.xlu0 %v26, 64
  %v1520 = vpop.permute.xlu0 %1519
  %v1525 = vsel %vm385, %v1505, %v1514
  %v1526 = vsel %vm385, %v1506, %v1516
  %v1527 = vsel %vm385, %v1507, %v1518
  %v1528 = vsel %vm385, %v1508, %v1520
  %v1529 = vpack.c.bf16 %v1526, %v1525
  %v1530 = vpack.c.bf16 %v1528, %v1527
  %v1531 = vld [vmem:[%s1 + $0x30] sm:$0xf]
  %v1532 = vld [vmem:[%s1 + $0x34] sm:$0xf]
  %v1533 = vld [vmem:[%s1 + $0x38] sm:$0xf]
  %v1534 = vld [vmem:[%s1 + $0x3c] sm:$0xf]
  %v1535 = vld [vmem:[%s1 + $0x40] sm:$0xf]
  %v1536 = vld [vmem:[%s1 + $0x44] sm:$0xf]
  %v1537 = vld [vmem:[%s1 + $0x48] sm:$0xf]
  %v1538 = vld [vmem:[%s1 + $0x4c] sm:$0xf]
  %v1539 = vld [vmem:[%s1 + $0x50] sm:$0xf]
  %v1540 = vld [vmem:[%s1 + $0x54] sm:$0xf]
  %v1541 = vld [vmem:[%s1 + $0x58] sm:$0xf]
  %v1542 = vld [vmem:[%s1 + $0x5c] sm:$0xf]
  %v1555 = vunpack.c.l.b16 %v1531
  %v1556 = vunpack.c.l.b16 %v1532
  %v1557 = vunpack.c.l.b16 %v1533
  %v1558 = vunpack.c.l.b16 %v1534
  %v1559 = vunpack.c.l.b16 %v1535
  %v1560 = vunpack.c.l.b16 %v1536
  %v1561 = vunpack.c.l.b16 %v1537
  %v1562 = vunpack.c.l.b16 %v1538
  %v1563 = vunpack.c.l.b16 %v1539
  %v1564 = vunpack.c.l.b16 %v1540
  %v1565 = vunpack.c.l.b16 %v1541
  %v1566 = vunpack.c.l.b16 %v1542
  %v1567 = vpack.c.b16 %v1556, %v1555
  %v1568 = vpack.c.b16 %v1558, %v1557
  %v1569 = vpack.c.b16 %v1560, %v1559
  %v1570 = vpack.c.b16 %v1562, %v1561
  %v1571 = vpack.c.b16 %v1564, %v1563
  %v1572 = vpack.c.b16 %v1566, %v1565
  %vm1579 = vcmask 785408
  %v1581 = vsel %vm1579, %v1529, 0
  %v1584 = vsel %vm1579, %v1530, 0
  %1586 = vmatpush.bf16.msra.mxu0 0
  %1587 = vmatpush.bf16.msra.mxu0 0
  %1588 = vmatpush.bf16.msra.mxu0 %v1572
  %1589 = vmatpush.bf16.msra.mxu0 %v1571
  %1590 = vmatpush.bf16.msra.mxu0 %v1570
  %1591 = vmatpush.bf16.msra.mxu0 %v1569
  %1592 = vmatpush.bf16.msra.mxu0 %v1568
  %1593 = vmatpush.bf16.msra.mxu0 %v1567
  %1594 = vmatmul.bf16.gmra.mxu0 %v1581
  %v1595 = vpop.f32.mrf.mxu0
  %v1596 = vadd.f32 0.0, %v1595
  %v1597 = vpop.f32.mrf.mxu0
  %v1598 = vadd.f32 0.0, %v1597
  %1599 = vmatmul.bf16.gmra.mxu0 %v1584
  %v1600 = vpop.f32.mrf.mxu0
  %v1601 = vadd.f32 0.0, %v1600
  %v1602 = vpop.f32.mrf.mxu0
  %v1603 = vadd.f32 0.0, %v1602
  %1604 = vdwg.mxu0
  %1605 = vst [vmem:[%s3] sm:$0xff] %v1596
  %1606 = vst [vmem:[%s3 + $0x8] sm:$0xff] %v1598
  %1607 = vst [vmem:[%s3 + $0x10] sm:$0xff] %v1601
  %1608 = vst [vmem:[%s3 + $0x18] sm:$0xff] %v1603
  // Predicated region
  $region14: #{mamba_decoder_forward.1} parent=0 // pred_check
    _
  $region15: #{mamba_decoder_forward.1} parent=0 // pred_check_branch
    %1610 = sbr.rel (0) target = $region17
  $region16: #{mamba_decoder_forward.1} parent=0 // pred_region
    _
  $region17: #{mamba_decoder_forward.1} parent=0 // pred_fallthru
    _
  // Predicated region
  $region18: #{mamba_decoder_forward.1} parent=0 // pred_check
    _
  $region19: #{mamba_decoder_forward.1} parent=0 // pred_check_branch
    %1612 = sbr.rel (0) target = $region21
  $region20: #{mamba_decoder_forward.1} parent=0 // pred_region
    _
  $region21: #{mamba_decoder_forward.1} parent=0 // pred_fallthru
    _

</llo_original>
